<compile_context>
chip_gen: v7x
topology: tpu7x:2x2x1
jax: 0.10.0
libtpu: 0.0.40
codegen_flags: <defaults>
</compile_context>

<pallas_src>
import functools

import jax
import jax.numpy as jnp
from jax.experimental import pallas as pl
from jax.experimental.pallas import tpu as pltpu


def gin_kernel(eps_ref, adj_ref, xk_ref, xi_ref, w_ref, b_ref, out_ref, acc_ref,
               *, tk, x_resident):
    # eps_ref : (1, 1)       SMEM scalar
    # adj_ref : (tm, tk)     int8 adjacency block A[i, k]               (streams)
    # xk_ref  : (tk, Fin) bf16 streamed X panel, or (N, Fin) bf16 resident X
    # xi_ref  : (tm, Fin)    f32 feature rows of node-tile i            (per-i)
    # w_ref   : (Fin, Fout)  bf16 W^T                                   (resident)
    # b_ref   : (1, Fout)    f32 bias                                   (resident)
    # out_ref : (tm, Fout)   output tile (written only at k == last)
    # acc_ref : (tm, Fin)    f32 accumulator for A @ X
    k = pl.program_id(1)
    nk = pl.num_programs(1)

    @pl.when(k == 0)
    def _():
        acc_ref[...] = jnp.zeros_like(acc_ref)

    if x_resident:
        start = pl.multiple_of(k * tk, tk)
        xk = xk_ref[pl.ds(start, tk), :]
    else:
        xk = xk_ref[...]

    # Partial neighbor aggregation: uniform bf16 x bf16 MXU dot, f32 accumulate.
    # int8 -> bf16 cast is exact for 0/1 edges and is VPU work hidden under the DMA.
    adj_blk = adj_ref[...].astype(jnp.float32).astype(jnp.bfloat16)
    acc_ref[...] += jnp.dot(adj_blk, xk, preferred_element_type=jnp.float32)

    @pl.when(k == nk - 1)
    def _():
        # Epilogue once per node-tile: h = (1+eps)*x_i + agg  (in place in acc_ref),
        # then Linear + ReLU with a bf16 h @ bf16 W^T -> f32 dot.
        one_plus_eps = 1.0 + eps_ref[0, 0]
        acc_ref[...] = one_plus_eps * xi_ref[...].astype(jnp.float32) + acc_ref[...]
        y = jnp.dot(acc_ref[...].astype(jnp.bfloat16), w_ref[...],
                    preferred_element_type=jnp.float32)
        y = y + b_ref[...].astype(jnp.float32)
        out_ref[...] = jnp.maximum(y, 0.0).astype(out_ref.dtype)


def gin_forward(adj, x, w, b, eps=0.0, *, tm=None, tk=None,
                out_dtype=None, vmem_limit_bytes=None):
    """GIN forward: ReLU(((1+eps)*x + A@x) @ W^T + b).

    adj : [N, N] 0/1 adjacency (any numeric dtype; values must be exactly 0/1 --
          it is narrowed to int8 for HBM streaming, which is only exact then).
    x   : [N, Fin] node features.
    w   : [Fout, Fin] (PyTorch nn.Linear layout), b: [Fout].
    """
    N, Fin = x.shape
    Fout, Fin_w = w.shape
    assert Fin_w == Fin

    # --- tile defaults ------------------------------------------------------
    # Larger tm amortizes X re-streaming (traffic ~ 1/tm); keep >= 2 i-tiles so the
    # "parallel" node axis can shard across v7x's two TensorCores.
    if tm is None:
        tm = 128
        for cand in (512, 256):
            if N % cand == 0 and N // cand >= 2:
                tm = cand
                break
    if tk is None:
        tk = 128
        for cand in (1024, 512, 256):
            if N % cand == 0:
                tk = cand
                break
    # TODO(synk): zero-pad adjacency rows/cols + X for node counts not tile-aligned.
    assert N % tm == 0 and N % tk == 0, "N must be divisible by tm and tk"

    if out_dtype is None:
        out_dtype = x.dtype

    # --- operand dtype narrowing (the A@X phase is HBM-bound) ----------------
    adj_i8 = jnp.asarray(adj).astype(jnp.int8)       # 1 B/edge, exact for 0/1 graphs
    x_bf16 = jnp.asarray(x).astype(jnp.bfloat16)     # streamed aggregation operand
    xi_f32 = jnp.asarray(x).astype(jnp.float32)      # self term kept in f32
    w_t = jnp.asarray(w).T.astype(jnp.bfloat16)      # (Fin, Fout), bf16 MXU path
    b2 = jnp.asarray(b).reshape(1, Fout).astype(jnp.float32)
    eps_arr = jnp.full((1, 1), eps, dtype=jnp.float32)

    # Keep the whole bf16 X resident in VMEM (DMA'd once, sliced in-kernel) when small;
    # otherwise stream (tk, Fin) panels per k-step.
    x_resident = (N * Fin * 2) <= (8 << 20)

    # --- VMEM budget ----------------------------------------------------------
    try:
        phys_vmem = int(pltpu.get_tpu_info().vmem_capacity_bytes)
    except Exception:
        phys_vmem = 64 << 20            # conservative: v7x has 64 MiB per TensorCore
    vmem_cap = phys_vmem * 3 // 4       # headroom for compiler scratch / semaphores

    out_isz = jnp.dtype(out_dtype).itemsize
    xk_bytes = (2 * N * Fin * 2) if x_resident else (2 * tk * Fin * 2)
    est = (2 * tm * tk * 1          # int8 adjacency blocks (double buffered)
           + xk_bytes               # bf16 X (resident or streamed panels)
           + 2 * tm * Fin * 4       # f32 xi tile
           + 2 * Fin * Fout * 2     # bf16 W^T
           + 2 * Fout * 4           # bias
           + 2 * tm * Fout * out_isz
           + tm * Fin * 4)          # f32 accumulator scratch
    if vmem_limit_bytes is None:
        vmem_limit_bytes = min(max(int(1.5 * est) + (4 << 20), 32 << 20), vmem_cap)

    grid = (N // tm, N // tk)

    if x_resident:
        xk_spec = pl.BlockSpec((N, Fin), lambda i, k: (0, 0))    # DMA'd once, stays put
    else:
        xk_spec = pl.BlockSpec((tk, Fin), lambda i, k: (k, 0))

    kernel = functools.partial(gin_kernel, tk=tk, x_resident=x_resident)

    # TODO(synk): if xprof shows exposed DMA at k-step boundaries, deepen the adjacency
    # pipeline (pipeline_mode=pl.Buffered(3) on the adjacency BlockSpec).
    return pl.pallas_call(
        kernel,
        out_shape=jax.ShapeDtypeStruct((N, Fout), out_dtype),
        grid=grid,
        in_specs=[
            pl.BlockSpec(memory_space=pltpu.SMEM),              # eps scalar
            pl.BlockSpec((tm, tk), lambda i, k: (i, k)),        # int8 adjacency (streams)
            xk_spec,                                            # bf16 X for aggregation
            pl.BlockSpec((tm, Fin), lambda i, k: (i, 0)),       # f32 X rows of node-tile i
            pl.BlockSpec((Fin, Fout), lambda i, k: (0, 0)),     # bf16 W^T (resident)
            pl.BlockSpec((1, Fout), lambda i, k: (0, 0)),       # bias (resident)
        ],
        out_specs=pl.BlockSpec((tm, Fout), lambda i, k: (i, 0)),
        scratch_shapes=[pltpu.VMEM((tm, Fin), jnp.float32)],
        compiler_params=pltpu.CompilerParams(
            dimension_semantics=("parallel", "arbitrary"),
            vmem_limit_bytes=vmem_limit_bytes),
    )(eps_arr, adj_i8, x_bf16, xi_f32, w_t, b2)


if __name__ == "__main__":
    key = jax.random.PRNGKey(0)
    N, Fin, Fout = 512, 128, 128
    init_eps = 0.0  # learn_eps=False default

    k_adj, k_x, k_w, k_b = jax.random.split(key, 4)

    # Deterministic random graph (dense 0/1 adjacency, no self loops) + node features.
    adj = (jax.random.uniform(k_adj, (N, N)) < 0.3).astype(jnp.float32)
    adj = adj * (1.0 - jnp.eye(N, dtype=jnp.float32))
    x = jax.random.normal(k_x, (N, Fin), dtype=jnp.float32)

    # nn.Linear(in_feats, out_feats) default init: U(-1/sqrt(in), 1/sqrt(in))
    bound = 1.0 / jnp.sqrt(jnp.float32(Fin))
    w = jax.random.uniform(k_w, (Fout, Fin), minval=-bound, maxval=bound, dtype=jnp.float32)
    b = jax.random.uniform(k_b, (Fout,), minval=-bound, maxval=bound, dtype=jnp.float32)

    # tk < N so the K-accumulation (pl.when init/finalize) path is exercised;
    # tm < N so the "parallel" node axis has >= 2 tiles (both v7x TensorCores busy).
    out = gin_forward(adj, x, w, b, eps=init_eps, tm=256, tk=256)
    out = jax.block_until_ready(out)
    assert out.shape == (N, Fout)

    # Reference 1: same operand precision as the kernel (bf16-rounded X / h / W with
    # f32 accumulation) -- should match tightly.
    x_bf = x.astype(jnp.bfloat16).astype(jnp.float32)
    w_bf = w.astype(jnp.bfloat16).astype(jnp.float32)
    agg = adj @ x_bf
    h = (1.0 + init_eps) * x + agg
    ref_q = jnp.maximum(h.astype(jnp.bfloat16).astype(jnp.float32) @ w_bf.T + b, 0.0)
    err_q = float(jnp.max(jnp.abs(out - ref_q)))
    assert jnp.allclose(out, ref_q, atol=2e-2, rtol=1e-2), err_q

    # Reference 2: pure f32 forward of the module -- loose tolerance (bf16 operands).
    ref_f32 = jnp.maximum(((1.0 + init_eps) * x + adj @ x) @ w.T + b, 0.0)
    err_f = float(jnp.max(jnp.abs(out - ref_f32)))
    assert jnp.allclose(out, ref_f32, atol=0.3, rtol=3e-2), err_f

    print("KERNEL_OK")
</pallas_src>

<mosaic_0001>
module attributes {stable_mosaic.version = 11 : i64} {
  func.func @gin_kernel(%arg0: i32, %arg1: i32, %arg2: memref<1x1xf32, #tpu.memory_space<smem>>, %arg3: memref<256x256xi8, #tpu.memory_space<vmem>>, %arg4: memref<512x128xbf16, #tpu.memory_space<vmem>>, %arg5: memref<256x128xf32, #tpu.memory_space<vmem>>, %arg6: memref<128x128xbf16, #tpu.memory_space<vmem>>, %arg7: memref<1x128xf32, #tpu.memory_space<vmem>>, %arg8: memref<256x128xf32, #tpu.memory_space<vmem>>, %arg9: memref<256x128xf32, #tpu.memory_space<vmem>>) attributes {dimension_semantics = [#tpu.dimension_semantics<parallel>, #tpu.dimension_semantics<arbitrary>], iteration_bounds = array<i64: 2, 2>, scalar_prefetch = 0 : i64, scratch_operands = 1 : i64, tpu.core_type = #tpu.core_type<tc>, window_params = [{transform_indices = @transform_0, window_bounds = array<i64: 1, 1>}, {transform_indices = @transform_1, window_bounds = array<i64: 256, 256>}, {pipeline_mode = #tpu.pipeline_mode<synchronous>, transform_indices = @transform_2, window_bounds = array<i64: 512, 128>}, {transform_indices = @transform_3, window_bounds = array<i64: 256, 128>}, {pipeline_mode = #tpu.pipeline_mode<synchronous>, transform_indices = @transform_4, window_bounds = array<i64: 128, 128>}, {pipeline_mode = #tpu.pipeline_mode<synchronous>, transform_indices = @transform_5, window_bounds = array<i64: 1, 128>}, {transform_indices = @transform_6, window_bounds = array<i64: 256, 128>}]} {
    %c0_i32 = arith.constant 0 : i32
    %0 = arith.cmpi eq, %arg1, %c0_i32 : i32
    %1 = arith.extui %0 : i1 to i32
    %c0_i32_0 = arith.constant 0 : i32
    %2 = arith.cmpi ne, %1, %c0_i32_0 : i32
    scf.if %2 {
      %cst_8 = arith.constant 0.000000e+00 : f32
      %17 = vector.broadcast %cst_8 : f32 to vector<256x128xf32>
      %c0_9 = arith.constant 0 : index
      %c0_10 = arith.constant 0 : index
      %18 = vector.load %arg9[%c0_9, %c0_10] : memref<256x128xf32, #tpu.memory_space<vmem>>, vector<256x128xf32>
      tpu.vector_store %arg9[%c0_9, %c0_10], %17 {strides = array<i32>} : memref<256x128xf32, #tpu.memory_space<vmem>>, vector<256x128xf32>,
    } else {
    }
    %c256_i32 = arith.constant 256 : i32
    %3 = arith.muli %arg1, %c256_i32 : i32
    %4 = tpu.assume_multiple %3, 256 : i32
    %5 = arith.index_cast %4 : i32 to index
    %c0 = arith.constant 0 : index
    %6 = vector.load %arg4[%5, %c0] : memref<512x128xbf16, #tpu.memory_space<vmem>>, vector<256x128xbf16>
    %c0_1 = arith.constant 0 : index
    %c0_2 = arith.constant 0 : index
    %7 = vector.load %arg3[%c0_1, %c0_2] : memref<256x256xi8, #tpu.memory_space<vmem>>, vector<256x256xi8>
    %8 = arith.sitofp %7 : vector<256x256xi8> to vector<256x256xf32>
    %9 = arith.truncf %8 : vector<256x256xf32> to vector<256x256xbf16>
    %c0_3 = arith.constant 0 : index
    %c0_4 = arith.constant 0 : index
    %10 = vector.load %arg9[%c0_3, %c0_4] : memref<256x128xf32, #tpu.memory_space<vmem>>, vector<256x128xf32>
    %cst = arith.constant dense<0.000000e+00> : vector<256x128xf32>
    %11 = tpu.matmul %9, %6, %cst {dimension_numbers = #tpu.dot_dimension_numbers<[1], [0], [0], [1], [0, 0, 1, 1], [], []>} : vector<256x256xbf16>, vector<256x128xbf16>, vector<256x128xf32> -> vector<256x128xf32>
    %12 = arith.addf %10, %11 : vector<256x128xf32>
    %c0_5 = arith.constant 0 : index
    %c0_6 = arith.constant 0 : index
    %13 = vector.load %arg9[%c0_5, %c0_6] : memref<256x128xf32, #tpu.memory_space<vmem>>, vector<256x128xf32>
    tpu.vector_store %arg9[%c0_5, %c0_6], %12 {strides = array<i32>} : memref<256x128xf32, #tpu.memory_space<vmem>>, vector<256x128xf32>,
    %c1_i32 = arith.constant 1 : i32
    %14 = arith.cmpi eq, %arg1, %c1_i32 : i32
    %15 = arith.extui %14 : i1 to i32
    %c0_i32_7 = arith.constant 0 : i32
    %16 = arith.cmpi ne, %15, %c0_i32_7 : i32
    scf.if %16 {
      %c0_8 = arith.constant 0 : index
      %c0_9 = arith.constant 0 : index
      %17 = memref.load %arg2[%c0_8, %c0_9] : memref<1x1xf32, #tpu.memory_space<smem>>
      %cst_10 = arith.constant 1.000000e+00 : f32
      %18 = arith.addf %cst_10, %17 : f32
      %c0_11 = arith.constant 0 : index
      %c0_12 = arith.constant 0 : index
      %19 = vector.load %arg5[%c0_11, %c0_12] : memref<256x128xf32, #tpu.memory_space<vmem>>, vector<256x128xf32>
      %20 = vector.broadcast %18 : f32 to vector<256x128xf32>
      %21 = arith.mulf %20, %19 : vector<256x128xf32>
      %c0_13 = arith.constant 0 : index
      %c0_14 = arith.constant 0 : index
      %22 = vector.load %arg9[%c0_13, %c0_14] : memref<256x128xf32, #tpu.memory_space<vmem>>, vector<256x128xf32>
      %23 = arith.addf %21, %22 : vector<256x128xf32>
      %c0_15 = arith.constant 0 : index
      %c0_16 = arith.constant 0 : index
      %24 = vector.load %arg9[%c0_15, %c0_16] : memref<256x128xf32, #tpu.memory_space<vmem>>, vector<256x128xf32>
      tpu.vector_store %arg9[%c0_15, %c0_16], %23 {strides = array<i32>} : memref<256x128xf32, #tpu.memory_space<vmem>>, vector<256x128xf32>,
      %c0_17 = arith.constant 0 : index
      %c0_18 = arith.constant 0 : index
      %25 = vector.load %arg9[%c0_17, %c0_18] : memref<256x128xf32, #tpu.memory_space<vmem>>, vector<256x128xf32>
      %26 = arith.truncf %25 : vector<256x128xf32> to vector<256x128xbf16>
      %c0_19 = arith.constant 0 : index
      %c0_20 = arith.constant 0 : index
      %27 = vector.load %arg6[%c0_19, %c0_20] : memref<128x128xbf16, #tpu.memory_space<vmem>>, vector<128x128xbf16>
      %cst_21 = arith.constant dense<0.000000e+00> : vector<256x128xf32>
      %28 = tpu.matmul %26, %27, %cst_21 {dimension_numbers = #tpu.dot_dimension_numbers<[1], [0], [0], [1], [0, 0, 1, 1], [], []>} : vector<256x128xbf16>, vector<128x128xbf16>, vector<256x128xf32> -> vector<256x128xf32>
      %c0_22 = arith.constant 0 : index
      %c0_23 = arith.constant 0 : index
      %29 = vector.load %arg7[%c0_22, %c0_23] : memref<1x128xf32, #tpu.memory_space<vmem>>, vector<1x128xf32>
      %30 = vector.broadcast %29 : vector<1x128xf32> to vector<256x128xf32>
      %31 = arith.addf %28, %30 : vector<256x128xf32>
      %cst_24 = arith.constant 0.000000e+00 : f32
      %32 = vector.broadcast %cst_24 : f32 to vector<256x128xf32>
      %33 = arith.maximumf %31, %32 : vector<256x128xf32>
      %c0_25 = arith.constant 0 : index
      %c0_26 = arith.constant 0 : index
      %34 = vector.load %arg8[%c0_25, %c0_26] : memref<256x128xf32, #tpu.memory_space<vmem>>, vector<256x128xf32>
      tpu.vector_store %arg8[%c0_25, %c0_26], %33 {strides = array<i32>} : memref<256x128xf32, #tpu.memory_space<vmem>>, vector<256x128xf32>,
    } else {
    }
    return
  }
  func.func @transform_0(%arg0: i32, %arg1: i32) -> (i32, i32) {
    %c0_i32 = arith.constant 0 : i32
    %c0_i32_0 = arith.constant 0 : i32
    %c0_i32_1 = arith.constant 0 : i32
    return %c0_i32, %c0_i32_0 : i32, i32
  }
  func.func @transform_1(%arg0: i32, %arg1: i32) -> (i32, i32) {
    %c0_i32 = arith.constant 0 : i32
    return %arg0, %arg1 : i32, i32
  }
  func.func @transform_2(%arg0: i32, %arg1: i32) -> (i32, i32) {
    %c0_i32 = arith.constant 0 : i32
    %c0_i32_0 = arith.constant 0 : i32
    %c0_i32_1 = arith.constant 0 : i32
    return %c0_i32, %c0_i32_0 : i32, i32
  }
  func.func @transform_3(%arg0: i32, %arg1: i32) -> (i32, i32) {
    %c0_i32 = arith.constant 0 : i32
    %c0_i32_0 = arith.constant 0 : i32
    return %arg0, %c0_i32 : i32, i32
  }
  func.func @transform_4(%arg0: i32, %arg1: i32) -> (i32, i32) {
    %c0_i32 = arith.constant 0 : i32
    %c0_i32_0 = arith.constant 0 : i32
    %c0_i32_1 = arith.constant 0 : i32
    return %c0_i32, %c0_i32_0 : i32, i32
  }
  func.func @transform_5(%arg0: i32, %arg1: i32) -> (i32, i32) {
    %c0_i32 = arith.constant 0 : i32
    %c0_i32_0 = arith.constant 0 : i32
    %c0_i32_1 = arith.constant 0 : i32
    return %c0_i32, %c0_i32_0 : i32, i32
  }
  func.func @transform_6(%arg0: i32, %arg1: i32) -> (i32, i32) {
    %c0_i32 = arith.constant 0 : i32
    %c0_i32_0 = arith.constant 0 : i32
    return %arg0, %c0_i32 : i32, i32
  }
}

</mosaic_0001>

<llo_original>
// kernel: tpu_custom_call.1
$region0: #{tpu_custom_call.1}
  #allocation0 [shape = 'u32[]', space=smem, size = 0x4, offset = 0x4, fixed_abs, tag = 'smem constant byte address 0x4 - core index']
  #allocation1 [shape = 'u32[144,128]{1,0:T(1,128)}', space=vmem, size = 0x12000, scoped, tag = 'internal scratch']
  #allocation2 [shape = 'f32[256,128]{1,0:T(8,128)}', space=vmem, size = 0x20000, scoped, tag = 'scratch operand']
  #allocation3 [shape = 'f32[1,1]{1,0:T(1,128)S(6)}', space=smem, size = 0x200, scoped, tag = 'scoped memory for tpu_custom_call.1']
  %s0 = inlined_call_operand.<no memory space> [shape: f32[1,1], index: 0, kind: input, shape index: {}]
  %s1 = inlined_call_operand.hbm [shape: s8[512,512], index: 1, kind: input, shape index: {}]
  %s2 = inlined_call_operand.hbm [shape: bf16[512,128], index: 2, kind: input, shape index: {}]
  %s3 = inlined_call_operand.hbm [shape: f32[512,128], index: 3, kind: input, shape index: {}]
  %s4 = inlined_call_operand.hbm [shape: bf16[128,128], index: 4, kind: input, shape index: {}]
  %s5 = inlined_call_operand.vmem [shape: f32[1,128], index: 5, kind: input, shape index: {}]
  %s6 = inlined_call_operand.hbm [shape: f32[512,128], index: 6, kind: output, shape index: {}]
  %s7 = sld [smem:[#allocation0]]
  $region81: #{tpu_custom_call.1} parent=0
    _
  %s9 = ssub.s32 1, %s7
  %s10 = scalar_select 0, %s9, %s7
  %11 = sst [smem:[#allocation3]] %s0
  $region1: #{tpu_custom_call.1} parent=0
    #allocation4 [shape = 'u8[131072]{0}', space=vmem, size = 0x20000, scoped, tag = 'input window, operand 1']
    #allocation5 [shape = 's32[2]{0}', space=sflag, size = 0x8, scoped, tag = 'scoped memory for tpu_custom_call.1']
    #allocation6 [shape = 's32[2]{0}', space=sflag, size = 0x8, scoped, tag = 'scoped memory for tpu_custom_call.1']
    #allocation7 [shape = 'u8[131072]{0}', space=vmem, size = 0x20000, scoped, tag = 'input window, operand 2, single buffered']
    #allocation8 [shape = 's32[1]{0}', space=sflag, size = 0x4, scoped, tag = 'scoped memory for tpu_custom_call.1']
    #allocation9 [shape = 'u8[262144]{0}', space=vmem, size = 0x40000, scoped, tag = 'input window, operand 3']
    #allocation10 [shape = 'u8[32768]{0}', space=vmem, size = 0x8000, scoped, tag = 'input window, operand 4, single buffered']
    #allocation11 [shape = 'u8[262144]{0}', space=vmem, size = 0x40000, scoped, tag = 'output window, operand 0']
    %12 = vsyncpa [#allocation5], 0
    %s13 = scalar_lea.sflag [#allocation5], 1
    %14 = vsyncpa %s13, 0
    %15 = vsyncpa [#allocation8], 0
    %16 = vsyncpa [#allocation6], 0
    %s17 = scalar_lea.sflag [#allocation6], 1
    %18 = vsyncpa %s17, 0
    loop: start=0, step=1, limit=6
    $region2: #{tpu_custom_call.1} parent=1 // loop_pre_header
      _
    $region3: #{tpu_custom_call.1} parent=1 // loop_header
      %s20 = sphi 0, %s24
      %p21 = scmp.ge.s32.totalorder %s20, 6
      %s27 = sphi 0, %s39
      %s28 = sphi 0, %s35
      %s29 = sphi 0, %s27
      %s30 = sphi 0, %s28
      %s31 = sphi 0, %s29
      %s32 = sphi 0, %s30
      %s40 = sphi 0, %s40
      %s42 = sphi 0, %s40
      %s43 = sphi 0, %s42
      %s57 = sphi 0, %s43
      %s65 = sphi 0, %s67
      %s68 = sphi 0, %s65
      %s69 = sphi 0, %s68
      %s85 = sphi 0, %s69
      %s89 = sphi 0, %s89
      %s91 = sphi 0, %s89
      %s92 = sphi 0, %s91
      %s106 = sphi 0, %s92
      %s112 = sphi 0, %s114
      %s115 = sphi 0, %s112
      %s116 = sphi 0, %s115
      %s132 = sphi 0, %s116
      %s136 = sphi 0, %s136
      %s138 = sphi 0, %s136
      %s139 = sphi 0, %s138
      %s153 = sphi 0, %s139
      %s157 = sphi 0, %s157
      %s159 = sphi 0, %s157
      %s160 = sphi 0, %s159
      %s174 = sphi 0, %s160
      %s180 = sphi 0, %s182
      %s183 = sphi 0, %s180
      %s184 = sphi 0, %s183
      %s200 = sphi 0, %s184
    $region4: #{tpu_custom_call.1} parent=1 // loop_header_branch
      %23 = sbr.rel (%p21) target = $region8
    $region5: #{tpu_custom_call.1} parent=1 // loop_body
      %s25 = ssub.s32 %s20, 1
      %s26 = ssub.s32 %s20, 2
      %s33 = sadd.s32 1, %s28
      %p34 = scmp.ge.s32.totalorder %s33, 2
      %s35 = scalar_select %p34, 0, %s33
      %s36 = sadd.s32 1, %s27
      %s37 = scalar_select %p34, %s36, %s27
      %p38 = scmp.ge.s32.totalorder %s37, 2
      %s39 = scalar_select %p38, 0, %s37
      %s41 = sadd.s32 %s40, 1
      %p44 = scmp.eq.s32.totalorder %s20, 3
      %p45 = scmp.ne.s32.totalorder %s40, %s42
      %p46 = scmp.eq.s32.totalorder %s20, 0
      %p47 = por %p45, %p46
      %p48 = scmp.ne.s32.totalorder %s40, %s42
      %p49 = scmp.eq.s32.totalorder %s25, 3
      %p50 = por %p48, %p49
      %p51 = scmp.ne.s32.totalorder %s42, %s43
      %p52 = scmp.eq.s32.totalorder %s25, 0
      %p53 = por %p51, %p52
      %p54 = scmp.ne.s32.totalorder %s42, %s43
      %p55 = scmp.eq.s32.totalorder %s26, 3
      %p56 = por %p54, %p55
      %p58 = scmp.ne.s32.totalorder %s43, %s57
      %p59 = scmp.eq.s32.totalorder %s26, 0
      %p60 = por %p58, %p59
      %s61 = ssub.s32 %s27, %s39
      %s62 = ssub.s32 %s28, %s35
      %s63 = sor.u32 %s61, %s62
      %p64 = scmp.eq.s32.totalorder %s63, 0
      %s66 = sadd.s32 %s65, 1
      %s67 = scalar_select %p64, %s65, %s66
      %p70 = pneg %p64
      %p71 = scmp.eq.s32.totalorder %s20, 3
      %p72 = por %p70, %p71
      %p73 = scmp.ne.s32.totalorder %s65, %s68
      %p74 = scmp.eq.s32.totalorder %s20, 0
      %p75 = por %p73, %p74
      %p76 = scmp.ne.s32.totalorder %s65, %s68
      %p77 = scmp.eq.s32.totalorder %s25, 3
      %p78 = por %p76, %p77
      %p79 = scmp.ne.s32.totalorder %s68, %s69
      %p80 = scmp.eq.s32.totalorder %s25, 0
      %p81 = por %p79, %p80
      %p82 = scmp.ne.s32.totalorder %s68, %s69
      %p83 = scmp.eq.s32.totalorder %s26, 3
      %p84 = por %p82, %p83
      %p86 = scmp.ne.s32.totalorder %s69, %s85
      %p87 = scmp.eq.s32.totalorder %s26, 0
      %p88 = por %p86, %p87
      %s90 = sadd.s32 %s89, 1
      %p93 = scmp.eq.s32.totalorder %s20, 3
      %p94 = scmp.ne.s32.totalorder %s89, %s91
      %p95 = scmp.eq.s32.totalorder %s20, 0
      %p96 = por %p94, %p95
      %p97 = scmp.ne.s32.totalorder %s89, %s91
      %p98 = scmp.eq.s32.totalorder %s25, 3
      %p99 = por %p97, %p98
      %p100 = scmp.ne.s32.totalorder %s91, %s92
      %p101 = scmp.eq.s32.totalorder %s25, 0
      %p102 = por %p100, %p101
      %p103 = scmp.ne.s32.totalorder %s91, %s92
      %p104 = scmp.eq.s32.totalorder %s26, 3
      %p105 = por %p103, %p104
      %p107 = scmp.ne.s32.totalorder %s92, %s106
      %p108 = scmp.eq.s32.totalorder %s26, 0
      %p109 = por %p107, %p108
      %s110 = ssub.s32 %s27, %s39
      %p111 = scmp.eq.s32.totalorder %s110, 0
      %s113 = sadd.s32 %s112, 1
      %s114 = scalar_select %p111, %s112, %s113
      %p117 = pneg %p111
      %p118 = scmp.eq.s32.totalorder %s20, 3
      %p119 = por %p117, %p118
      %p120 = scmp.ne.s32.totalorder %s112, %s115
      %p121 = scmp.eq.s32.totalorder %s20, 0
      %p122 = por %p120, %p121
      %p123 = scmp.ne.s32.totalorder %s112, %s115
      %p124 = scmp.eq.s32.totalorder %s25, 3
      %p125 = por %p123, %p124
      %p126 = scmp.ne.s32.totalorder %s115, %s116
      %p127 = scmp.eq.s32.totalorder %s25, 0
      %p128 = por %p126, %p127
      %p129 = scmp.ne.s32.totalorder %s115, %s116
      %p130 = scmp.eq.s32.totalorder %s26, 3
      %p131 = por %p129, %p130
      %p133 = scmp.ne.s32.totalorder %s116, %s132
      %p134 = scmp.eq.s32.totalorder %s26, 0
      %p135 = por %p133, %p134
      %s137 = sadd.s32 %s136, 1
      %p140 = scmp.eq.s32.totalorder %s20, 3
      %p141 = scmp.ne.s32.totalorder %s136, %s138
      %p142 = scmp.eq.s32.totalorder %s20, 0
      %p143 = por %p141, %p142
      %p144 = scmp.ne.s32.totalorder %s136, %s138
      %p145 = scmp.eq.s32.totalorder %s25, 3
      %p146 = por %p144, %p145
      %p147 = scmp.ne.s32.totalorder %s138, %s139
      %p148 = scmp.eq.s32.totalorder %s25, 0
      %p149 = por %p147, %p148
      %p150 = scmp.ne.s32.totalorder %s138, %s139
      %p151 = scmp.eq.s32.totalorder %s26, 3
      %p152 = por %p150, %p151
      %p154 = scmp.ne.s32.totalorder %s139, %s153
      %p155 = scmp.eq.s32.totalorder %s26, 0
      %p156 = por %p154, %p155
      %s158 = sadd.s32 %s157, 1
      %p161 = scmp.eq.s32.totalorder %s20, 3
      %p162 = scmp.ne.s32.totalorder %s157, %s159
      %p163 = scmp.eq.s32.totalorder %s20, 0
      %p164 = por %p162, %p163
      %p165 = scmp.ne.s32.totalorder %s157, %s159
      %p166 = scmp.eq.s32.totalorder %s25, 3
      %p167 = por %p165, %p166
      %p168 = scmp.ne.s32.totalorder %s159, %s160
      %p169 = scmp.eq.s32.totalorder %s25, 0
      %p170 = por %p168, %p169
      %p171 = scmp.ne.s32.totalorder %s159, %s160
      %p172 = scmp.eq.s32.totalorder %s26, 3
      %p173 = por %p171, %p172
      %p175 = scmp.ne.s32.totalorder %s160, %s174
      %p176 = scmp.eq.s32.totalorder %s26, 0
      %p177 = por %p175, %p176
      %s178 = ssub.s32 %s27, %s39
      %p179 = scmp.eq.s32.totalorder %s178, 0
      %s181 = sadd.s32 %s180, 1
      %s182 = scalar_select %p179, %s180, %s181
      %p185 = pneg %p179
      %p186 = scmp.eq.s32.totalorder %s20, 3
      %p187 = por %p185, %p186
      %p188 = scmp.ne.s32.totalorder %s180, %s183
      %p189 = scmp.eq.s32.totalorder %s20, 0
      %p190 = por %p188, %p189
      %p191 = scmp.ne.s32.totalorder %s180, %s183
      %p192 = scmp.eq.s32.totalorder %s25, 3
      %p193 = por %p191, %p192
      %p194 = scmp.ne.s32.totalorder %s183, %s184
      %p195 = scmp.eq.s32.totalorder %s25, 0
      %p196 = por %p194, %p195
      %p197 = scmp.ne.s32.totalorder %s183, %s184
      %p198 = scmp.eq.s32.totalorder %s26, 3
      %p199 = por %p197, %p198
      %p201 = scmp.ne.s32.totalorder %s184, %s200
      %p202 = scmp.eq.s32.totalorder %s26, 0
      %p203 = por %p201, %p202
      %p204 = scmp.le.s32.totalorder 1, %s20
      %p205 = scmp.lt.s32.totalorder %s20, 5
      %p206 = pnand %p204, %p205
      %p207 = pneg %p206
      // Predicated region
      $region9: #{tpu_custom_call.1} parent=5 // pred_check
        _
      $region10: #{tpu_custom_call.1} parent=5 // pred_check_branch
        %209 = sbr.rel (%p206) target = $region12
      $region11: #{tpu_custom_call.1} parent=5 // pred_region
        %s210 = ssub.s32 %s20, 1
        // Predicated region
        $region13: #{tpu_custom_call.1} parent=11 // pred_check
          %p211 = pneg %p53
        $region14: #{tpu_custom_call.1} parent=11 // pred_check_branch
          %213 = sbr.rel (%p211) target = $region16
        $region15: #{tpu_custom_call.1} parent=11 // pred_region
          _
        $region16: #{tpu_custom_call.1} parent=11 // pred_fallthru
          _
        // Predicated region
        $region17: #{tpu_custom_call.1} parent=11 // pred_check
          %p214 = pneg %p102
        $region18: #{tpu_custom_call.1} parent=11 // pred_check_branch
          %216 = sbr.rel (%p214) target = $region20
        $region19: #{tpu_custom_call.1} parent=11 // pred_region
          %s218 = ssub.s32 4096, 4096
          %219 = vsyncadd [#allocation8], %s218
          %s220 = sshll.u32 [#allocation7], 4
          %s221 = int_to_ptr.vmem [resolvable:$true] %s220
          %226 = dma.hbm_to_vmem [thread:$0]  %s2, 4096, %s221, [#allocation8], 64, 64, 4
        $region20: #{tpu_custom_call.1} parent=11 // pred_fallthru
          _
        // Predicated region
        $region21: #{tpu_custom_call.1} parent=11 // pred_check
          %p227 = pneg %p149
        $region22: #{tpu_custom_call.1} parent=11 // pred_check_branch
          %229 = sbr.rel (%p227) target = $region24
        $region23: #{tpu_custom_call.1} parent=11 // pred_region
          %s231 = ssub.s32 1024, 1024
          %232 = vsyncadd [#allocation8], %s231
          %s233 = sshll.u32 [#allocation10], 4
          %s234 = int_to_ptr.vmem [resolvable:$true] %s233
          %239 = dma.hbm_to_vmem [thread:$0]  %s4, 1024, %s234, [#allocation8], 64, 64, 4
        $region24: #{tpu_custom_call.1} parent=11 // pred_fallthru
          _
        // Predicated region
        $region25: #{tpu_custom_call.1} parent=11 // pred_check
          %p240 = pneg %p170
        $region26: #{tpu_custom_call.1} parent=11 // pred_check_branch
          %242 = sbr.rel (%p240) target = $region28
        $region27: #{tpu_custom_call.1} parent=11 // pred_region
          _
        $region28: #{tpu_custom_call.1} parent=11 // pred_fallthru
          _
      $region12: #{tpu_custom_call.1} parent=5 // pred_fallthru
        _
      %p243 = scmp.lt.s32.totalorder %s20, 4
      // Predicated region
      $region29: #{tpu_custom_call.1} parent=5 // pred_check
        %p244 = pneg %p243
      $region30: #{tpu_custom_call.1} parent=5 // pred_check_branch
        %246 = sbr.rel (%p244) target = $region32
      $region31: #{tpu_custom_call.1} parent=5 // pred_region
        // Predicated region
        $region33: #{tpu_custom_call.1} parent=31 // pred_check
          %p247 = pneg %p75
        $region34: #{tpu_custom_call.1} parent=31 // pred_check_branch
          %249 = sbr.rel (%p247) target = $region36
        $region35: #{tpu_custom_call.1} parent=31 // pred_region
          %s250 = sand.u32 %s20, 1
          %s251 = scalar_lea.sflag [#allocation5], %s250
          %s252 = sand.u32 %s65, 1
          %s253 = smul.addr %s252, 128
          %s254 = scalar_lea.vmem [#allocation4], %s253
          %s255 = smul.u32 8, %s27
          %s256 = smul.u32 2, %s28
          %s258 = ssub.s32 2048, 2048
          %259 = vsyncadd %s251, %s258
          %s260 = smul.addr %s255, 4
          %s261 = sadd.s32 %s256, %s260
          %s262 = smul.addr %s261, 128
          %s263 = scalar_lea.hbm %s1, %s262
          %s264 = sshll.u32 %s254, 4
          %s265 = int_to_ptr.vmem [resolvable:$true] %s264
          %270 = dma.hbm_to_vmem [thread:$0]  %s263, 2048, %s265, %s251, 512, 256, 16
        $region36: #{tpu_custom_call.1} parent=31 // pred_fallthru
          _
        // Predicated region
        $region37: #{tpu_custom_call.1} parent=31 // pred_check
          %p271 = pneg %p122
        $region38: #{tpu_custom_call.1} parent=31 // pred_check_branch
          %273 = sbr.rel (%p271) target = $region40
        $region39: #{tpu_custom_call.1} parent=31 // pred_region
          %s274 = sand.u32 %s20, 1
          %s275 = scalar_lea.sflag [#allocation5], %s274
          %s276 = sand.u32 %s112, 1
          %s277 = smul.addr %s276, 256
          %s278 = scalar_lea.vmem [#allocation9], %s277
          %s279 = smul.u32 32, %s27
          %s281 = ssub.s32 4096, 4096
          %282 = vsyncadd %s275, %s281
          %s283 = smul.addr %s279, 128
          %s284 = scalar_lea.hbm %s3, %s283
          %s285 = sshll.u32 %s278, 4
          %s286 = int_to_ptr.vmem [resolvable:$true] %s285
          %291 = dma.hbm_to_vmem [thread:$0]  %s284, 4096, %s286, %s275, 128, 128, 8
        $region40: #{tpu_custom_call.1} parent=31 // pred_fallthru
          _
      $region32: #{tpu_custom_call.1} parent=5 // pred_fallthru
        _
      %p292 = scmp.le.s32.totalorder 1, %s20
      %p293 = scmp.lt.s32.totalorder %s20, 5
      %p294 = pnand %p292, %p293
      %p295 = pneg %p294
      // Predicated region
      $region41: #{tpu_custom_call.1} parent=5 // pred_check
        _
      $region42: #{tpu_custom_call.1} parent=5 // pred_check_branch
        %297 = sbr.rel (%p294) target = $region44
      $region43: #{tpu_custom_call.1} parent=5 // pred_region
        %s298 = ssub.s32 %s20, 1
        %s299 = sand.u32 %s25, 1
        %s300 = scalar_lea.sflag [#allocation5], %s299
        %s301 = sand.u32 %s68, 1
        %s302 = smul.addr %s301, 128
        %s303 = scalar_lea.vmem [#allocation4], %s302
        // Predicated region
        $region45: #{tpu_custom_call.1} parent=43 // pred_check
          %p304 = pneg %p81
        $region46: #{tpu_custom_call.1} parent=43 // pred_check_branch
          %306 = sbr.rel (%p304) target = $region48
        $region47: #{tpu_custom_call.1} parent=43 // pred_region
          %307 = dma.done %s300, 2048
        $region48: #{tpu_custom_call.1} parent=43 // pred_fallthru
          _
        // Predicated region
        $region49: #{tpu_custom_call.1} parent=43 // pred_check
          %p308 = pneg %p102
        $region50: #{tpu_custom_call.1} parent=43 // pred_check_branch
          %310 = sbr.rel (%p308) target = $region52
        $region51: #{tpu_custom_call.1} parent=43 // pred_region
          %311 = dma.done [#allocation8], 4096
        $region52: #{tpu_custom_call.1} parent=43 // pred_fallthru
          _
        %s312 = sand.u32 %s25, 1
        %s313 = scalar_lea.sflag [#allocation5], %s312
        %s314 = sand.u32 %s115, 1
        %s315 = smul.addr %s314, 256
        %s316 = scalar_lea.vmem [#allocation9], %s315
        // Predicated region
        $region53: #{tpu_custom_call.1} parent=43 // pred_check
          %p317 = pneg %p128
        $region54: #{tpu_custom_call.1} parent=43 // pred_check_branch
          %319 = sbr.rel (%p317) target = $region56
        $region55: #{tpu_custom_call.1} parent=43 // pred_region
          %320 = dma.done %s313, 4096
        $region56: #{tpu_custom_call.1} parent=43 // pred_fallthru
          _
        // Predicated region
        $region57: #{tpu_custom_call.1} parent=43 // pred_check
          %p321 = pneg %p149
        $region58: #{tpu_custom_call.1} parent=43 // pred_check_branch
          %323 = sbr.rel (%p321) target = $region60
        $region59: #{tpu_custom_call.1} parent=43 // pred_region
          %324 = dma.done [#allocation8], 1024
        $region60: #{tpu_custom_call.1} parent=43 // pred_fallthru
          _
        %p325 = pneg %p53
        %p326 = pneg %p50
        %s327 = sand.u32 %s25, 1
        %s328 = scalar_lea.sflag [#allocation5], %s327
        %s329 = sand.u32 %s68, 1
        %s330 = smul.addr %s329, 128
        %s331 = scalar_lea.vmem [#allocation4], %s330
        %p332 = pneg %p81
        %p333 = pneg %p78
        %p334 = pneg %p102
        %p335 = pneg %p99
        %s336 = sand.u32 %s25, 1
        %s337 = scalar_lea.sflag [#allocation5], %s336
        %s338 = sand.u32 %s115, 1
        %s339 = smul.addr %s338, 256
        %s340 = scalar_lea.vmem [#allocation9], %s339
        %p341 = pneg %p128
        %p342 = pneg %p125
        %p343 = pneg %p149
        %p344 = pneg %p146
        %p345 = pneg %p170
        %p346 = pneg %p167
        %p347 = pneg %p196
        %p348 = pneg %p193
        %s349 = sand.u32 %s183, 1
        %s350 = scalar_lea.sflag [#allocation6], %s349
        %s351 = sand.u32 %s183, 1
        %s352 = smul.addr %s351, 256
        %s353 = scalar_lea.vmem [#allocation11], %s352
        %s354 = smul.u32 8, %s29
        %s355 = smul.u32 2, %s30
        %s356 = smul.u32 32, %s29
        %s357 = smul.u32 32, %s29
        %p359 = scmp.eq.s32.totalorder %s30, 0
        // Predicated region
        $region61: #{tpu_custom_call.1} parent=43 // pred_check
          %p360 = pneg %p359
        $region62: #{tpu_custom_call.1} parent=43 // pred_check_branch
          %362 = sbr.rel (%p360) target = $region64
        $region63: #{tpu_custom_call.1} parent=43 // pred_region
          %363 = vst [vmem:[#allocation2] sm:$0xff] 0.0
          %364 = vst [vmem:[#allocation2 + $0x8] sm:$0xff] 0.0
          %365 = vst [vmem:[#allocation2 + $0x10] sm:$0xff] 0.0
          %366 = vst [vmem:[#allocation2 + $0x18] sm:$0xff] 0.0
          %367 = vst [vmem:[#allocation2 + $0x20] sm:$0xff] 0.0
          %368 = vst [vmem:[#allocation2 + $0x28] sm:$0xff] 0.0
          %369 = vst [vmem:[#allocation2 + $0x30] sm:$0xff] 0.0
          %370 = vst [vmem:[#allocation2 + $0x38] sm:$0xff] 0.0
          %371 = vst [vmem:[#allocation2 + $0x40] sm:$0xff] 0.0
          %372 = vst [vmem:[#allocation2 + $0x48] sm:$0xff] 0.0
          %373 = vst [vmem:[#allocation2 + $0x50] sm:$0xff] 0.0
          %374 = vst [vmem:[#allocation2 + $0x58] sm:$0xff] 0.0
          %375 = vst [vmem:[#allocation2 + $0x60] sm:$0xff] 0.0
          %376 = vst [vmem:[#allocation2 + $0x68] sm:$0xff] 0.0
          %377 = vst [vmem:[#allocation2 + $0x70] sm:$0xff] 0.0
          %378 = vst [vmem:[#allocation2 + $0x78] sm:$0xff] 0.0
          %379 = vst [vmem:[#allocation2 + $0x80] sm:$0xff] 0.0
          %380 = vst [vmem:[#allocation2 + $0x88] sm:$0xff] 0.0
          %381 = vst [vmem:[#allocation2 + $0x90] sm:$0xff] 0.0
          %382 = vst [vmem:[#allocation2 + $0x98] sm:$0xff] 0.0
          %383 = vst [vmem:[#allocation2 + $0xa0] sm:$0xff] 0.0
          %384 = vst [vmem:[#allocation2 + $0xa8] sm:$0xff] 0.0
          %385 = vst [vmem:[#allocation2 + $0xb0] sm:$0xff] 0.0
          %386 = vst [vmem:[#allocation2 + $0xb8] sm:$0xff] 0.0
          %387 = vst [vmem:[#allocation2 + $0xc0] sm:$0xff] 0.0
          %388 = vst [vmem:[#allocation2 + $0xc8] sm:$0xff] 0.0
          %389 = vst [vmem:[#allocation2 + $0xd0] sm:$0xff] 0.0
          %390 = vst [vmem:[#allocation2 + $0xd8] sm:$0xff] 0.0
          %391 = vst [vmem:[#allocation2 + $0xe0] sm:$0xff] 0.0
          %392 = vst [vmem:[#allocation2 + $0xe8] sm:$0xff] 0.0
          %393 = vst [vmem:[#allocation2 + $0xf0] sm:$0xff] 0.0
          %394 = vst [vmem:[#allocation2 + $0xf8] sm:$0xff] 0.0
        $region64: #{tpu_custom_call.1} parent=43 // pred_fallthru
          _
        %s395 = smul.u32 %s30, 256
        %s396 = sshra.s32 %s395, 3
        %s397 = sand.u32 %s395, 7
        %s398 = smul.addr %s396, 4
        %s399 = scalar_lea.vmem [#allocation7], %s398
        %v400 = vld [vmem:[%s399] sm:$0xf]
        %v401 = vld [vmem:[%s399 + $0x4] sm:$0xf]
        %v402 = vld [vmem:[%s399 + $0x8] sm:$0xf]
        %v403 = vld [vmem:[%s399 + $0xc] sm:$0xf]
        %v404 = vld [vmem:[%s399 + $0x10] sm:$0xf]
        %v405 = vld [vmem:[%s399 + $0x14] sm:$0xf]
        %v406 = vld [vmem:[%s399 + $0x18] sm:$0xf]
        %v407 = vld [vmem:[%s399 + $0x1c] sm:$0xf]
        %v408 = vld [vmem:[%s399 + $0x20] sm:$0xf]
        %v409 = vld [vmem:[%s399 + $0x24] sm:$0xf]
        %v410 = vld [vmem:[%s399 + $0x28] sm:$0xf]
        %v411 = vld [vmem:[%s399 + $0x2c] sm:$0xf]
        %v412 = vld [vmem:[%s399 + $0x30] sm:$0xf]
        %v413 = vld [vmem:[%s399 + $0x34] sm:$0xf]
        %v414 = vld [vmem:[%s399 + $0x38] sm:$0xf]
        %v415 = vld [vmem:[%s399 + $0x3c] sm:$0xf]
        %v416 = vld [vmem:[%s399 + $0x40] sm:$0xf]
        %v417 = vld [vmem:[%s399 + $0x44] sm:$0xf]
        %v418 = vld [vmem:[%s399 + $0x48] sm:$0xf]
        %v419 = vld [vmem:[%s399 + $0x4c] sm:$0xf]
        %v420 = vld [vmem:[%s399 + $0x50] sm:$0xf]
        %v421 = vld [vmem:[%s399 + $0x54] sm:$0xf]
        %v422 = vld [vmem:[%s399 + $0x58] sm:$0xf]
        %v423 = vld [vmem:[%s399 + $0x5c] sm:$0xf]
        %v424 = vld [vmem:[%s399 + $0x60] sm:$0xf]
        %v425 = vld [vmem:[%s399 + $0x64] sm:$0xf]
        %v426 = vld [vmem:[%s399 + $0x68] sm:$0xf]
        %v427 = vld [vmem:[%s399 + $0x6c] sm:$0xf]
        %v428 = vld [vmem:[%s399 + $0x70] sm:$0xf]
        %v429 = vld [vmem:[%s399 + $0x74] sm:$0xf]
        %v430 = vld [vmem:[%s399 + $0x78] sm:$0xf]
        %v431 = vld [vmem:[%s399 + $0x7c] sm:$0xf]
        %v432 = vld [vmem:[%s303] sm:$0xff]
        %v433 = vld [vmem:[%s303 + $0x8] sm:$0xff]
        %v434 = vld [vmem:[%s303 + $0x10] sm:$0xff]
        %v435 = vld [vmem:[%s303 + $0x18] sm:$0xff]
        %v436 = vld [vmem:[%s303 + $0x20] sm:$0xff]
        %v437 = vld [vmem:[%s303 + $0x28] sm:$0xff]
        %v438 = vld [vmem:[%s303 + $0x30] sm:$0xff]
        %v439 = vld [vmem:[%s303 + $0x38] sm:$0xff]
        %v440 = vld [vmem:[%s303 + $0x40] sm:$0xff]
        %v441 = vld [vmem:[%s303 + $0x48] sm:$0xff]
        %v442 = vld [vmem:[%s303 + $0x50] sm:$0xff]
        %v443 = vld [vmem:[%s303 + $0x58] sm:$0xff]
        %v444 = vld [vmem:[%s303 + $0x60] sm:$0xff]
        %v445 = vld [vmem:[%s303 + $0x68] sm:$0xff]
        %v446 = vld [vmem:[%s303 + $0x70] sm:$0xff]
        %v447 = vld [vmem:[%s303 + $0x78] sm:$0xff]
        %v448 = vunpack.c.l.s8.bf16 %v432
        %v449 = vunpack.c.l.s8.bf16 %v433
        %v450 = vunpack.c.h.s8.bf16 %v432
        %v451 = vunpack.c.h.s8.bf16 %v433
        %v452 = vunpack.c.l.s8.bf16 %v434
        %v453 = vunpack.c.l.s8.bf16 %v435
        %v454 = vunpack.c.h.s8.bf16 %v434
        %v455 = vunpack.c.h.s8.bf16 %v435
        %v456 = vunpack.c.l.s8.bf16 %v436
        %v457 = vunpack.c.l.s8.bf16 %v437
        %v458 = vunpack.c.h.s8.bf16 %v436
        %v459 = vunpack.c.h.s8.bf16 %v437
        %v460 = vunpack.c.l.s8.bf16 %v438
        %v461 = vunpack.c.l.s8.bf16 %v439
        %v462 = vunpack.c.h.s8.bf16 %v438
        %v463 = vunpack.c.h.s8.bf16 %v439
        %v464 = vunpack.c.l.s8.bf16 %v440
        %v465 = vunpack.c.l.s8.bf16 %v441
        %v466 = vunpack.c.h.s8.bf16 %v440
        %v467 = vunpack.c.h.s8.bf16 %v441
        %v468 = vunpack.c.l.s8.bf16 %v442
        %v469 = vunpack.c.l.s8.bf16 %v443
        %v470 = vunpack.c.h.s8.bf16 %v442
        %v471 = vunpack.c.h.s8.bf16 %v443
        %v472 = vunpack.c.l.s8.bf16 %v444
        %v473 = vunpack.c.l.s8.bf16 %v445
        %v474 = vunpack.c.h.s8.bf16 %v444
        %v475 = vunpack.c.h.s8.bf16 %v445
        %v476 = vunpack.c.l.s8.bf16 %v446
        %v477 = vunpack.c.l.s8.bf16 %v447
        %v478 = vunpack.c.h.s8.bf16 %v446
        %v479 = vunpack.c.h.s8.bf16 %v447
        %v480 = vld [vmem:[#allocation2] sm:$0xff]
        %v481 = vld [vmem:[#allocation2 + $0x8] sm:$0xff]
        %v482 = vld [vmem:[#allocation2 + $0x10] sm:$0xff]
        %v483 = vld [vmem:[#allocation2 + $0x18] sm:$0xff]
        %v484 = vld [vmem:[#allocation2 + $0x20] sm:$0xff]
        %v485 = vld [vmem:[#allocation2 + $0x28] sm:$0xff]
        %v486 = vld [vmem:[#allocation2 + $0x30] sm:$0xff]
        %v487 = vld [vmem:[#allocation2 + $0x38] sm:$0xff]
        %v488 = vld [vmem:[#allocation2 + $0x40] sm:$0xff]
        %v489 = vld [vmem:[#allocation2 + $0x48] sm:$0xff]
        %v490 = vld [vmem:[#allocation2 + $0x50] sm:$0xff]
        %v491 = vld [vmem:[#allocation2 + $0x58] sm:$0xff]
        %v492 = vld [vmem:[#allocation2 + $0x60] sm:$0xff]
        %v493 = vld [vmem:[#allocation2 + $0x68] sm:$0xff]
        %v494 = vld [vmem:[#allocation2 + $0x70] sm:$0xff]
        %v495 = vld [vmem:[#allocation2 + $0x78] sm:$0xff]
        %v496 = vld [vmem:[#allocation2 + $0x80] sm:$0xff]
        %v497 = vld [vmem:[#allocation2 + $0x88] sm:$0xff]
        %v498 = vld [vmem:[#allocation2 + $0x90] sm:$0xff]
        %v499 = vld [vmem:[#allocation2 + $0x98] sm:$0xff]
        %v500 = vld [vmem:[#allocation2 + $0xa0] sm:$0xff]
        %v501 = vld [vmem:[#allocation2 + $0xa8] sm:$0xff]
        %v502 = vld [vmem:[#allocation2 + $0xb0] sm:$0xff]
        %v503 = vld [vmem:[#allocation2 + $0xb8] sm:$0xff]
        %v504 = vld [vmem:[#allocation2 + $0xc0] sm:$0xff]
        %v505 = vld [vmem:[#allocation2 + $0xc8] sm:$0xff]
        %v506 = vld [vmem:[#allocation2 + $0xd0] sm:$0xff]
        %v507 = vld [vmem:[#allocation2 + $0xd8] sm:$0xff]
        %v508 = vld [vmem:[#allocation2 + $0xe0] sm:$0xff]
        %v509 = vld [vmem:[#allocation2 + $0xe8] sm:$0xff]
        %v510 = vld [vmem:[#allocation2 + $0xf0] sm:$0xff]
        %v511 = vld [vmem:[#allocation2 + $0xf8] sm:$0xff]
        %v544 = vunpack.c.l.b16 %v400
        %v545 = vunpack.c.l.b16 %v401
        %v546 = vunpack.c.l.b16 %v402
        %v547 = vunpack.c.l.b16 %v403
        %v548 = vunpack.c.l.b16 %v404
        %v549 = vunpack.c.l.b16 %v405
        %v550 = vunpack.c.l.b16 %v406
        %v551 = vunpack.c.l.b16 %v407
        %v552 = vunpack.c.l.b16 %v408
        %v553 = vunpack.c.l.b16 %v409
        %v554 = vunpack.c.l.b16 %v410
        %v555 = vunpack.c.l.b16 %v411
        %v556 = vunpack.c.l.b16 %v412
        %v557 = vunpack.c.l.b16 %v413
        %v558 = vunpack.c.l.b16 %v414
        %v559 = vunpack.c.l.b16 %v415
        %v560 = vunpack.c.l.b16 %v416
        %v561 = vunpack.c.l.b16 %v417
        %v562 = vunpack.c.l.b16 %v418
        %v563 = vunpack.c.l.b16 %v419
        %v564 = vunpack.c.l.b16 %v420
        %v565 = vunpack.c.l.b16 %v421
        %v566 = vunpack.c.l.b16 %v422
        %v567 = vunpack.c.l.b16 %v423
        %v568 = vunpack.c.l.b16 %v424
        %v569 = vunpack.c.l.b16 %v425
        %v570 = vunpack.c.l.b16 %v426
        %v571 = vunpack.c.l.b16 %v427
        %v572 = vunpack.c.l.b16 %v428
        %v573 = vunpack.c.l.b16 %v429
        %v574 = vunpack.c.l.b16 %v430
        %v575 = vunpack.c.l.b16 %v431
        %v576 = vpack.c.b16 %v545, %v544
        %v577 = vpack.c.b16 %v547, %v546
        %v578 = vpack.c.b16 %v549, %v548
        %v579 = vpack.c.b16 %v551, %v550
        %v580 = vpack.c.b16 %v553, %v552
        %v581 = vpack.c.b16 %v555, %v554
        %v582 = vpack.c.b16 %v557, %v556
        %v583 = vpack.c.b16 %v559, %v558
        %v584 = vpack.c.b16 %v561, %v560
        %v585 = vpack.c.b16 %v563, %v562
        %v586 = vpack.c.b16 %v565, %v564
        %v587 = vpack.c.b16 %v567, %v566
        %v588 = vpack.c.b16 %v569, %v568
        %v589 = vpack.c.b16 %v571, %v570
        %v590 = vpack.c.b16 %v573, %v572
        %v591 = vpack.c.b16 %v575, %v574
        %608 = vmatprep.subr.bf16.mxu0 0
        %609 = vmatpush1.bf16.msra.mxu0 %v576
        %610 = vmatprep.subr.bf16.mxu0 0
        %611 = vmatpush1.bf16.msra.mxu0 %v577
        %612 = vmatprep.subr.bf16.mxu0 0
        %613 = vmatpush1.bf16.msra.mxu0 %v578
        %614 = vmatprep.subr.bf16.mxu0 0
        %615 = vmatpush1.bf16.msra.mxu0 %v579
        %616 = vmatprep.subr.bf16.mxu0 0
        %617 = vmatpush1.bf16.msra.mxu0 %v580
        %618 = vmatprep.subr.bf16.mxu0 0
        %619 = vmatpush1.bf16.msra.mxu0 %v581
        %620 = vmatprep.subr.bf16.mxu0 0
        %621 = vmatpush1.bf16.msra.mxu0 %v582
        %622 = vmatprep.subr.bf16.mxu0 0
        %623 = vmatpush1.bf16.msra.mxu0 %v583
        %624 = vmatprep.subr.bf16.mxu0 0
        %625 = vmatpush1.bf16.msra.mxu0 %v584
        %626 = vmatprep.subr.bf16.mxu0 0
        %627 = vmatpush1.bf16.msra.mxu0 %v585
        %628 = vmatprep.subr.bf16.mxu0 0
        %629 = vmatpush1.bf16.msra.mxu0 %v586
        %630 = vmatprep.subr.bf16.mxu0 0
        %631 = vmatpush1.bf16.msra.mxu0 %v587
        %632 = vmatprep.subr.bf16.mxu0 0
        %633 = vmatpush1.bf16.msra.mxu0 %v588
        %634 = vmatprep.subr.bf16.mxu0 0
        %635 = vmatpush1.bf16.msra.mxu0 %v589
        %636 = vmatprep.subr.bf16.mxu0 0
        %637 = vmatpush1.bf16.msra.mxu0 %v590
        %638 = vmatprep.subr.bf16.mxu0 0
        %639 = vmatpush1.bf16.msra.mxu0 %v591
        %640 = vmatprep.mubr.bf16.mxu0 %v449
        %641 = vmatmul.mubr.bf16.gmra.mrb[0].mxu0 %v448
        %v642 = vpop.f32.mrb[0].mxu0
        %v643 = vadd.f32 0.0, %v642
        %v644 = vpop.f32.mrb[0].mxu0
        %v645 = vpop.f32.mrb[0].mxu0
        %v646 = vadd.f32 0.0, %v645
        %v647 = vpop.f32.mrb[0].mxu0
        %648 = vmatprep.mubr.bf16.mxu0 %v451
        %649 = vmatmul.mubr.bf16.gmra.mrb[0].mxu0 %v450
        %v650 = vpop.f32.mrb[0].mxu0
        %v651 = vadd.f32 0.0, %v650
        %v652 = vpop.f32.mrb[0].mxu0
        %v653 = vpop.f32.mrb[0].mxu0
        %v654 = vadd.f32 0.0, %v653
        %v655 = vpop.f32.mrb[0].mxu0
        %656 = vmatprep.mubr.bf16.mxu0 %v453
        %657 = vmatmul.mubr.bf16.gmra.mrb[0].mxu0 %v452
        %v658 = vpop.f32.mrb[0].mxu0
        %v659 = vadd.f32 0.0, %v658
        %v660 = vpop.f32.mrb[0].mxu0
        %v661 = vpop.f32.mrb[0].mxu0
        %v662 = vadd.f32 0.0, %v661
        %v663 = vpop.f32.mrb[0].mxu0
        %664 = vmatprep.mubr.bf16.mxu0 %v455
        %665 = vmatmul.mubr.bf16.gmra.mrb[0].mxu0 %v454
        %v666 = vpop.f32.mrb[0].mxu0
        %v667 = vadd.f32 0.0, %v666
        %v668 = vpop.f32.mrb[0].mxu0
        %v669 = vpop.f32.mrb[0].mxu0
        %v670 = vadd.f32 0.0, %v669
        %v671 = vpop.f32.mrb[0].mxu0
        %672 = vmatprep.mubr.bf16.mxu0 %v457
        %673 = vmatmul.mubr.bf16.gmra.mrb[0].mxu0 %v456
        %v674 = vpop.f32.mrb[0].mxu0
        %v675 = vadd.f32 0.0, %v674
        %v676 = vpop.f32.mrb[0].mxu0
        %v677 = vpop.f32.mrb[0].mxu0
        %v678 = vadd.f32 0.0, %v677
        %v679 = vpop.f32.mrb[0].mxu0
        %680 = vmatprep.mubr.bf16.mxu0 %v459
        %681 = vmatmul.mubr.bf16.gmra.mrb[0].mxu0 %v458
        %v682 = vpop.f32.mrb[0].mxu0
        %v683 = vadd.f32 0.0, %v682
        %v684 = vpop.f32.mrb[0].mxu0
        %v685 = vpop.f32.mrb[0].mxu0
        %v686 = vadd.f32 0.0, %v685
        %v687 = vpop.f32.mrb[0].mxu0
        %688 = vmatprep.mubr.bf16.mxu0 %v461
        %689 = vmatmul.mubr.bf16.gmra.mrb[0].mxu0 %v460
        %v690 = vpop.f32.mrb[0].mxu0
        %v691 = vadd.f32 0.0, %v690
        %v692 = vpop.f32.mrb[0].mxu0
        %v693 = vpop.f32.mrb[0].mxu0
        %v694 = vadd.f32 0.0, %v693
        %v695 = vpop.f32.mrb[0].mxu0
        %696 = vmatprep.mubr.bf16.mxu0 %v463
        %697 = vmatmul.mubr.bf16.gmra.mrb[0].mxu0 %v462
        %v698 = vpop.f32.mrb[0].mxu0
        %v699 = vadd.f32 0.0, %v698
        %v700 = vpop.f32.mrb[0].mxu0
        %v701 = vpop.f32.mrb[0].mxu0
        %v702 = vadd.f32 0.0, %v701
        %v703 = vpop.f32.mrb[0].mxu0
        %704 = vmatprep.mubr.bf16.mxu0 %v465
        %705 = vmatmul.mubr.bf16.gmra.mrb[0].mxu0 %v464
        %v706 = vpop.f32.mrb[0].mxu0
        %v707 = vadd.f32 0.0, %v706
        %v708 = vpop.f32.mrb[0].mxu0
        %v709 = vpop.f32.mrb[0].mxu0
        %v710 = vadd.f32 0.0, %v709
        %v711 = vpop.f32.mrb[0].mxu0
        %712 = vmatprep.mubr.bf16.mxu0 %v467
        %713 = vmatmul.mubr.bf16.gmra.mrb[0].mxu0 %v466
        %v714 = vpop.f32.mrb[0].mxu0
        %v715 = vadd.f32 0.0, %v714
        %v716 = vpop.f32.mrb[0].mxu0
        %v717 = vpop.f32.mrb[0].mxu0
        %v718 = vadd.f32 0.0, %v717
        %v719 = vpop.f32.mrb[0].mxu0
        %720 = vmatprep.mubr.bf16.mxu0 %v469
        %721 = vmatmul.mubr.bf16.gmra.mrb[0].mxu0 %v468
        %v722 = vpop.f32.mrb[0].mxu0
        %v723 = vadd.f32 0.0, %v722
        %v724 = vpop.f32.mrb[0].mxu0
        %v725 = vpop.f32.mrb[0].mxu0
        %v726 = vadd.f32 0.0, %v725
        %v727 = vpop.f32.mrb[0].mxu0
        %728 = vmatprep.mubr.bf16.mxu0 %v471
        %729 = vmatmul.mubr.bf16.gmra.mrb[0].mxu0 %v470
        %v730 = vpop.f32.mrb[0].mxu0
        %v731 = vadd.f32 0.0, %v730
        %v732 = vpop.f32.mrb[0].mxu0
        %v733 = vpop.f32.mrb[0].mxu0
        %v734 = vadd.f32 0.0, %v733
        %v735 = vpop.f32.mrb[0].mxu0
        %736 = vmatprep.mubr.bf16.mxu0 %v473
        %737 = vmatmul.mubr.bf16.gmra.mrb[0].mxu0 %v472
        %v738 = vpop.f32.mrb[0].mxu0
        %v739 = vadd.f32 0.0, %v738
        %v740 = vpop.f32.mrb[0].mxu0
        %v741 = vpop.f32.mrb[0].mxu0
        %v742 = vadd.f32 0.0, %v741
        %v743 = vpop.f32.mrb[0].mxu0
        %744 = vmatprep.mubr.bf16.mxu0 %v475
        %745 = vmatmul.mubr.bf16.gmra.mrb[0].mxu0 %v474
        %v746 = vpop.f32.mrb[0].mxu0
        %v747 = vadd.f32 0.0, %v746
        %v748 = vpop.f32.mrb[0].mxu0
        %v749 = vpop.f32.mrb[0].mxu0
        %v750 = vadd.f32 0.0, %v749
        %v751 = vpop.f32.mrb[0].mxu0
        %752 = vmatprep.mubr.bf16.mxu0 %v477
        %753 = vmatmul.mubr.bf16.gmra.mrb[0].mxu0 %v476
        %v754 = vpop.f32.mrb[0].mxu0
        %v755 = vadd.f32 0.0, %v754
        %v756 = vpop.f32.mrb[0].mxu0
        %v757 = vpop.f32.mrb[0].mxu0
        %v758 = vadd.f32 0.0, %v757
        %v759 = vpop.f32.mrb[0].mxu0
        %760 = vmatprep.mubr.bf16.mxu0 %v479
        %761 = vmatmul.mubr.bf16.gmra.mrb[0].mxu0 %v478
        %v762 = vpop.f32.mrb[0].mxu0
        %v763 = vadd.f32 0.0, %v762
        %v764 = vpop.f32.mrb[0].mxu0
        %v765 = vpop.f32.mrb[0].mxu0
        %v766 = vadd.f32 0.0, %v765
        %v767 = vpop.f32.mrb[0].mxu0
        %768 = vdwg.mxu0
        %v769 = vadd.f32 %v480, %v643
        %v770 = vadd.f32 %v481, %v646
        %v771 = vadd.f32 %v482, %v651
        %v772 = vadd.f32 %v483, %v654
        %v773 = vadd.f32 %v484, %v659
        %v774 = vadd.f32 %v485, %v662
        %v775 = vadd.f32 %v486, %v667
        %v776 = vadd.f32 %v487, %v670
        %v777 = vadd.f32 %v488, %v675
        %v778 = vadd.f32 %v489, %v678
        %v779 = vadd.f32 %v490, %v683
        %v780 = vadd.f32 %v491, %v686
        %v781 = vadd.f32 %v492, %v691
        %v782 = vadd.f32 %v493, %v694
        %v783 = vadd.f32 %v494, %v699
        %v784 = vadd.f32 %v495, %v702
        %v785 = vadd.f32 %v496, %v707
        %v786 = vadd.f32 %v497, %v710
        %v787 = vadd.f32 %v498, %v715
        %v788 = vadd.f32 %v499, %v718
        %v789 = vadd.f32 %v500, %v723
        %v790 = vadd.f32 %v501, %v726
        %v791 = vadd.f32 %v502, %v731
        %v792 = vadd.f32 %v503, %v734
        %v793 = vadd.f32 %v504, %v739
        %v794 = vadd.f32 %v505, %v742
        %v795 = vadd.f32 %v506, %v747
        %v796 = vadd.f32 %v507, %v750
        %v797 = vadd.f32 %v508, %v755
        %v798 = vadd.f32 %v509, %v758
        %v799 = vadd.f32 %v510, %v763
        %v800 = vadd.f32 %v511, %v766
        %801 = vst [vmem:[#allocation2] sm:$0xff] %v769
        %802 = vst [vmem:[#allocation2 + $0x8] sm:$0xff] %v770
        %803 = vst [vmem:[#allocation2 + $0x10] sm:$0xff] %v771
        %804 = vst [vmem:[#allocation2 + $0x18] sm:$0xff] %v772
        %805 = vst [vmem:[#allocation2 + $0x20] sm:$0xff] %v773
        %806 = vst [vmem:[#allocation2 + $0x28] sm:$0xff] %v774
        %807 = vst [vmem:[#allocation2 + $0x30] sm:$0xff] %v775
        %808 = vst [vmem:[#allocation2 + $0x38] sm:$0xff] %v776
        %809 = vst [vmem:[#allocation2 + $0x40] sm:$0xff] %v777
        %810 = vst [vmem:[#allocation2 + $0x48] sm:$0xff] %v778
        %811 = vst [vmem:[#allocation2 + $0x50] sm:$0xff] %v779
        %812 = vst [vmem:[#allocation2 + $0x58] sm:$0xff] %v780
        %813 = vst [vmem:[#allocation2 + $0x60] sm:$0xff] %v781
        %814 = vst [vmem:[#allocation2 + $0x68] sm:$0xff] %v782
        %815 = vst [vmem:[#allocation2 + $0x70] sm:$0xff] %v783
        %816 = vst [vmem:[#allocation2 + $0x78] sm:$0xff] %v784
        %817 = vst [vmem:[#allocation2 + $0x80] sm:$0xff] %v785
        %818 = vst [vmem:[#allocation2 + $0x88] sm:$0xff] %v786
        %819 = vst [vmem:[#allocation2 + $0x90] sm:$0xff] %v787
        %820 = vst [vmem:[#allocation2 + $0x98] sm:$0xff] %v788
        %821 = vst [vmem:[#allocation2 + $0xa0] sm:$0xff] %v789
        %822 = vst [vmem:[#allocation2 + $0xa8] sm:$0xff] %v790
        %823 = vst [vmem:[#allocation2 + $0xb0] sm:$0xff] %v791
        %824 = vst [vmem:[#allocation2 + $0xb8] sm:$0xff] %v792
        %825 = vst [vmem:[#allocation2 + $0xc0] sm:$0xff] %v793
        %826 = vst [vmem:[#allocation2 + $0xc8] sm:$0xff] %v794
        %827 = vst [vmem:[#allocation2 + $0xd0] sm:$0xff] %v795
        %828 = vst [vmem:[#allocation2 + $0xd8] sm:$0xff] %v796
        %829 = vst [vmem:[#allocation2 + $0xe0] sm:$0xff] %v797
        %830 = vst [vmem:[#allocation2 + $0xe8] sm:$0xff] %v798
        %831 = vst [vmem:[#allocation2 + $0xf0] sm:$0xff] %v799
        %832 = vst [vmem:[#allocation2 + $0xf8] sm:$0xff] %v800
        %p833 = scmp.eq.s32.totalorder %s30, 1
        // Predicated region
        $region65: #{tpu_custom_call.1} parent=43 // pred_check
          %p834 = pneg %p833
        $region66: #{tpu_custom_call.1} parent=43 // pred_check_branch
          %836 = sbr.rel (%p834) target = $region68
        $region67: #{tpu_custom_call.1} parent=43 // pred_region
          %s837 = sld [smem:[#allocation3]]
          %s838 = sadd.f32 %s837, 1.0
          %v839 = vld [vmem:[%s316] sm:$0xff]
          %v840 = vld [vmem:[%s316 + $0x8] sm:$0xff]
          %v841 = vld [vmem:[%s316 + $0x10] sm:$0xff]
          %v842 = vld [vmem:[%s316 + $0x18] sm:$0xff]
          %v843 = vld [vmem:[%s316 + $0x20] sm:$0xff]
          %v844 = vld [vmem:[%s316 + $0x28] sm:$0xff]
          %v845 = vld [vmem:[%s316 + $0x30] sm:$0xff]
          %v846 = vld [vmem:[%s316 + $0x38] sm:$0xff]
          %v847 = vld [vmem:[%s316 + $0x40] sm:$0xff]
          %v848 = vld [vmem:[%s316 + $0x48] sm:$0xff]
          %v849 = vld [vmem:[%s316 + $0x50] sm:$0xff]
          %v850 = vld [vmem:[%s316 + $0x58] sm:$0xff]
          %v851 = vld [vmem:[%s316 + $0x60] sm:$0xff]
          %v852 = vld [vmem:[%s316 + $0x68] sm:$0xff]
          %v853 = vld [vmem:[%s316 + $0x70] sm:$0xff]
          %v854 = vld [vmem:[%s316 + $0x78] sm:$0xff]
          %v855 = vld [vmem:[%s316 + $0x80] sm:$0xff]
          %v856 = vld [vmem:[%s316 + $0x88] sm:$0xff]
          %v857 = vld [vmem:[%s316 + $0x90] sm:$0xff]
          %v858 = vld [vmem:[%s316 + $0x98] sm:$0xff]
          %v859 = vld [vmem:[%s316 + $0xa0] sm:$0xff]
          %v860 = vld [vmem:[%s316 + $0xa8] sm:$0xff]
          %v861 = vld [vmem:[%s316 + $0xb0] sm:$0xff]
          %v862 = vld [vmem:[%s316 + $0xb8] sm:$0xff]
          %v863 = vld [vmem:[%s316 + $0xc0] sm:$0xff]
          %v864 = vld [vmem:[%s316 + $0xc8] sm:$0xff]
          %v865 = vld [vmem:[%s316 + $0xd0] sm:$0xff]
          %v866 = vld [vmem:[%s316 + $0xd8] sm:$0xff]
          %v867 = vld [vmem:[%s316 + $0xe0] sm:$0xff]
          %v868 = vld [vmem:[%s316 + $0xe8] sm:$0xff]
          %v869 = vld [vmem:[%s316 + $0xf0] sm:$0xff]
          %v870 = vld [vmem:[%s316 + $0xf8] sm:$0xff]
          %v871 = vstv %s838
          %v872 = vmul.f32 %v871, %v839
          %v873 = vmul.f32 %v871, %v840
          %v874 = vmul.f32 %v871, %v841
          %v875 = vmul.f32 %v871, %v842
          %v876 = vmul.f32 %v871, %v843
          %v877 = vmul.f32 %v871, %v844
          %v878 = vmul.f32 %v871, %v845
          %v879 = vmul.f32 %v871, %v846
          %v880 = vmul.f32 %v871, %v847
          %v881 = vmul.f32 %v871, %v848
          %v882 = vmul.f32 %v871, %v849
          %v883 = vmul.f32 %v871, %v850
          %v884 = vmul.f32 %v871, %v851
          %v885 = vmul.f32 %v871, %v852
          %v886 = vmul.f32 %v871, %v853
          %v887 = vmul.f32 %v871, %v854
          %v888 = vmul.f32 %v871, %v855
          %v889 = vmul.f32 %v871, %v856
          %v890 = vmul.f32 %v871, %v857
          %v891 = vmul.f32 %v871, %v858
          %v892 = vmul.f32 %v871, %v859
          %v893 = vmul.f32 %v871, %v860
          %v894 = vmul.f32 %v871, %v861
          %v895 = vmul.f32 %v871, %v862
          %v896 = vmul.f32 %v871, %v863
          %v897 = vmul.f32 %v871, %v864
          %v898 = vmul.f32 %v871, %v865
          %v899 = vmul.f32 %v871, %v866
          %v900 = vmul.f32 %v871, %v867
          %v901 = vmul.f32 %v871, %v868
          %v902 = vmul.f32 %v871, %v869
          %v903 = vmul.f32 %v871, %v870
          %v904 = vld [vmem:[#allocation2] sm:$0xff]
          %v905 = vld [vmem:[#allocation2 + $0x8] sm:$0xff]
          %v906 = vld [vmem:[#allocation2 + $0x10] sm:$0xff]
          %v907 = vld [vmem:[#allocation2 + $0x18] sm:$0xff]
          %v908 = vld [vmem:[#allocation2 + $0x20] sm:$0xff]
          %v909 = vld [vmem:[#allocation2 + $0x28] sm:$0xff]
          %v910 = vld [vmem:[#allocation2 + $0x30] sm:$0xff]
          %v911 = vld [vmem:[#allocation2 + $0x38] sm:$0xff]
          %v912 = vld [vmem:[#allocation2 + $0x40] sm:$0xff]
          %v913 = vld [vmem:[#allocation2 + $0x48] sm:$0xff]
          %v914 = vld [vmem:[#allocation2 + $0x50] sm:$0xff]
          %v915 = vld [vmem:[#allocation2 + $0x58] sm:$0xff]
          %v916 = vld [vmem:[#allocation2 + $0x60] sm:$0xff]
          %v917 = vld [vmem:[#allocation2 + $0x68] sm:$0xff]
          %v918 = vld [vmem:[#allocation2 + $0x70] sm:$0xff]
          %v919 = vld [vmem:[#allocation2 + $0x78] sm:$0xff]
          %v920 = vld [vmem:[#allocation2 + $0x80] sm:$0xff]
          %v921 = vld [vmem:[#allocation2 + $0x88] sm:$0xff]
          %v922 = vld [vmem:[#allocation2 + $0x90] sm:$0xff]
          %v923 = vld [vmem:[#allocation2 + $0x98] sm:$0xff]
          %v924 = vld [vmem:[#allocation2 + $0xa0] sm:$0xff]
          %v925 = vld [vmem:[#allocation2 + $0xa8] sm:$0xff]
          %v926 = vld [vmem:[#allocation2 + $0xb0] sm:$0xff]
          %v927 = vld [vmem:[#allocation2 + $0xb8] sm:$0xff]
          %v928 = vld [vmem:[#allocation2 + $0xc0] sm:$0xff]
          %v929 = vld [vmem:[#allocation2 + $0xc8] sm:$0xff]
          %v930 = vld [vmem:[#allocation2 + $0xd0] sm:$0xff]
          %v931 = vld [vmem:[#allocation2 + $0xd8] sm:$0xff]
          %v932 = vld [vmem:[#allocation2 + $0xe0] sm:$0xff]
          %v933 = vld [vmem:[#allocation2 + $0xe8] sm:$0xff]
          %v934 = vld [vmem:[#allocation2 + $0xf0] sm:$0xff]
          %v935 = vld [vmem:[#allocation2 + $0xf8] sm:$0xff]
          %v936 = vadd.f32 %v872, %v904
          %v937 = vadd.f32 %v873, %v905
          %v938 = vadd.f32 %v874, %v906
          %v939 = vadd.f32 %v875, %v907
          %v940 = vadd.f32 %v876, %v908
          %v941 = vadd.f32 %v877, %v909
          %v942 = vadd.f32 %v878, %v910
          %v943 = vadd.f32 %v879, %v911
          %v944 = vadd.f32 %v880, %v912
          %v945 = vadd.f32 %v881, %v913
          %v946 = vadd.f32 %v882, %v914
          %v947 = vadd.f32 %v883, %v915
          %v948 = vadd.f32 %v884, %v916
          %v949 = vadd.f32 %v885, %v917
          %v950 = vadd.f32 %v886, %v918
          %v951 = vadd.f32 %v887, %v919
          %v952 = vadd.f32 %v888, %v920
          %v953 = vadd.f32 %v889, %v921
          %v954 = vadd.f32 %v890, %v922
          %v955 = vadd.f32 %v891, %v923
          %v956 = vadd.f32 %v892, %v924
          %v957 = vadd.f32 %v893, %v925
          %v958 = vadd.f32 %v894, %v926
          %v959 = vadd.f32 %v895, %v927
          %v960 = vadd.f32 %v896, %v928
          %v961 = vadd.f32 %v897, %v929
          %v962 = vadd.f32 %v898, %v930
          %v963 = vadd.f32 %v899, %v931
          %v964 = vadd.f32 %v900, %v932
          %v965 = vadd.f32 %v901, %v933
          %v966 = vadd.f32 %v902, %v934
          %v967 = vadd.f32 %v903, %v935
          %968 = vst [vmem:[#allocation2] sm:$0xff] %v936
          %969 = vst [vmem:[#allocation2 + $0x8] sm:$0xff] %v937
          %970 = vst [vmem:[#allocation2 + $0x10] sm:$0xff] %v938
          %971 = vst [vmem:[#allocation2 + $0x18] sm:$0xff] %v939
          %972 = vst [vmem:[#allocation2 + $0x20] sm:$0xff] %v940
          %973 = vst [vmem:[#allocation2 + $0x28] sm:$0xff] %v941
          %974 = vst [vmem:[#allocation2 + $0x30] sm:$0xff] %v942
          %975 = vst [vmem:[#allocation2 + $0x38] sm:$0xff] %v943
          %976 = vst [vmem:[#allocation2 + $0x40] sm:$0xff] %v944
          %977 = vst [vmem:[#allocation2 + $0x48] sm:$0xff] %v945
          %978 = vst [vmem:[#allocation2 + $0x50] sm:$0xff] %v946
          %979 = vst [vmem:[#allocation2 + $0x58] sm:$0xff] %v947
          %980 = vst [vmem:[#allocation2 + $0x60] sm:$0xff] %v948
          %981 = vst [vmem:[#allocation2 + $0x68] sm:$0xff] %v949
          %982 = vst [vmem:[#allocation2 + $0x70] sm:$0xff] %v950
          %983 = vst [vmem:[#allocation2 + $0x78] sm:$0xff] %v951
          %984 = vst [vmem:[#allocation2 + $0x80] sm:$0xff] %v952
          %985 = vst [vmem:[#allocation2 + $0x88] sm:$0xff] %v953
          %986 = vst [vmem:[#allocation2 + $0x90] sm:$0xff] %v954
          %987 = vst [vmem:[#allocation2 + $0x98] sm:$0xff] %v955
          %988 = vst [vmem:[#allocation2 + $0xa0] sm:$0xff] %v956
          %989 = vst [vmem:[#allocation2 + $0xa8] sm:$0xff] %v957
          %990 = vst [vmem:[#allocation2 + $0xb0] sm:$0xff] %v958
          %991 = vst [vmem:[#allocation2 + $0xb8] sm:$0xff] %v959
          %992 = vst [vmem:[#allocation2 + $0xc0] sm:$0xff] %v960
          %993 = vst [vmem:[#allocation2 + $0xc8] sm:$0xff] %v961
          %994 = vst [vmem:[#allocation2 + $0xd0] sm:$0xff] %v962
          %995 = vst [vmem:[#allocation2 + $0xd8] sm:$0xff] %v963
          %996 = vst [vmem:[#allocation2 + $0xe0] sm:$0xff] %v964
          %997 = vst [vmem:[#allocation2 + $0xe8] sm:$0xff] %v965
          %998 = vst [vmem:[#allocation2 + $0xf0] sm:$0xff] %v966
          %999 = vst [vmem:[#allocation2 + $0xf8] sm:$0xff] %v967
          %v1000 = vld [vmem:[#allocation2] sm:$0xff]
          %v1001 = vld [vmem:[#allocation2 + $0x8] sm:$0xff]
          %v1002 = vld [vmem:[#allocation2 + $0x10] sm:$0xff]
          %v1003 = vld [vmem:[#allocation2 + $0x18] sm:$0xff]
          %v1004 = vld [vmem:[#allocation2 + $0x20] sm:$0xff]
          %v1005 = vld [vmem:[#allocation2 + $0x28] sm:$0xff]
          %v1006 = vld [vmem:[#allocation2 + $0x30] sm:$0xff]
          %v1007 = vld [vmem:[#allocation2 + $0x38] sm:$0xff]
          %v1008 = vld [vmem:[#allocation2 + $0x40] sm:$0xff]
          %v1009 = vld [vmem:[#allocation2 + $0x48] sm:$0xff]
          %v1010 = vld [vmem:[#allocation2 + $0x50] sm:$0xff]
          %v1011 = vld [vmem:[#allocation2 + $0x58] sm:$0xff]
          %v1012 = vld [vmem:[#allocation2 + $0x60] sm:$0xff]
          %v1013 = vld [vmem:[#allocation2 + $0x68] sm:$0xff]
          %v1014 = vld [vmem:[#allocation2 + $0x70] sm:$0xff]
          %v1015 = vld [vmem:[#allocation2 + $0x78] sm:$0xff]
          %v1016 = vld [vmem:[#allocation2 + $0x80] sm:$0xff]
          %v1017 = vld [vmem:[#allocation2 + $0x88] sm:$0xff]
          %v1018 = vld [vmem:[#allocation2 + $0x90] sm:$0xff]
          %v1019 = vld [vmem:[#allocation2 + $0x98] sm:$0xff]
          %v1020 = vld [vmem:[#allocation2 + $0xa0] sm:$0xff]
          %v1021 = vld [vmem:[#allocation2 + $0xa8] sm:$0xff]
          %v1022 = vld [vmem:[#allocation2 + $0xb0] sm:$0xff]
          %v1023 = vld [vmem:[#allocation2 + $0xb8] sm:$0xff]
          %v1024 = vld [vmem:[#allocation2 + $0xc0] sm:$0xff]
          %v1025 = vld [vmem:[#allocation2 + $0xc8] sm:$0xff]
          %v1026 = vld [vmem:[#allocation2 + $0xd0] sm:$0xff]
          %v1027 = vld [vmem:[#allocation2 + $0xd8] sm:$0xff]
          %v1028 = vld [vmem:[#allocation2 + $0xe0] sm:$0xff]
          %v1029 = vld [vmem:[#allocation2 + $0xe8] sm:$0xff]
          %v1030 = vld [vmem:[#allocation2 + $0xf0] sm:$0xff]
          %v1031 = vld [vmem:[#allocation2 + $0xf8] sm:$0xff]
          %v1032 = vpack.c.bf16 %v1001, %v1000
          %v1033 = vpack.c.bf16 %v1003, %v1002
          %v1034 = vpack.c.bf16 %v1005, %v1004
          %v1035 = vpack.c.bf16 %v1007, %v1006
          %v1036 = vpack.c.bf16 %v1009, %v1008
          %v1037 = vpack.c.bf16 %v1011, %v1010
          %v1038 = vpack.c.bf16 %v1013, %v1012
          %v1039 = vpack.c.bf16 %v1015, %v1014
          %v1040 = vpack.c.bf16 %v1017, %v1016
          %v1041 = vpack.c.bf16 %v1019, %v1018
          %v1042 = vpack.c.bf16 %v1021, %v1020
          %v1043 = vpack.c.bf16 %v1023, %v1022
          %v1044 = vpack.c.bf16 %v1025, %v1024
          %v1045 = vpack.c.bf16 %v1027, %v1026
          %v1046 = vpack.c.bf16 %v1029, %v1028
          %v1047 = vpack.c.bf16 %v1031, %v1030
          %v1048 = vld [vmem:[#allocation10] sm:$0xf]
          %v1049 = vld [vmem:[#allocation10 + $0x4] sm:$0xf]
          %v1050 = vld [vmem:[#allocation10 + $0x8] sm:$0xf]
          %v1051 = vld [vmem:[#allocation10 + $0xc] sm:$0xf]
          %v1052 = vld [vmem:[#allocation10 + $0x10] sm:$0xf]
          %v1053 = vld [vmem:[#allocation10 + $0x14] sm:$0xf]
          %v1054 = vld [vmem:[#allocation10 + $0x18] sm:$0xf]
          %v1055 = vld [vmem:[#allocation10 + $0x1c] sm:$0xf]
          %v1056 = vld [vmem:[#allocation10 + $0x20] sm:$0xf]
          %v1057 = vld [vmem:[#allocation10 + $0x24] sm:$0xf]
          %v1058 = vld [vmem:[#allocation10 + $0x28] sm:$0xf]
          %v1059 = vld [vmem:[#allocation10 + $0x2c] sm:$0xf]
          %v1060 = vld [vmem:[#allocation10 + $0x30] sm:$0xf]
          %v1061 = vld [vmem:[#allocation10 + $0x34] sm:$0xf]
          %v1062 = vld [vmem:[#allocation10 + $0x38] sm:$0xf]
          %v1063 = vld [vmem:[#allocation10 + $0x3c] sm:$0xf]
          %v1064 = vld [vmem:[%s5] sm:$0x1]
          %v1066 = vlaneseq
          %v1067 = vshrl.u32 %v1066, 7
          %v1068 = vsub.s32 0, %v1067
          %v1069 = vrot.slane %v1064, %v1068
          %v1087 = vunpack.c.l.b16 %v1048
          %v1088 = vunpack.c.l.b16 %v1049
          %v1089 = vunpack.c.l.b16 %v1050
          %v1090 = vunpack.c.l.b16 %v1051
          %v1091 = vunpack.c.l.b16 %v1052
          %v1092 = vunpack.c.l.b16 %v1053
          %v1093 = vunpack.c.l.b16 %v1054
          %v1094 = vunpack.c.l.b16 %v1055
          %v1095 = vunpack.c.l.b16 %v1056
          %v1096 = vunpack.c.l.b16 %v1057
          %v1097 = vunpack.c.l.b16 %v1058
          %v1098 = vunpack.c.l.b16 %v1059
          %v1099 = vunpack.c.l.b16 %v1060
          %v1100 = vunpack.c.l.b16 %v1061
          %v1101 = vunpack.c.l.b16 %v1062
          %v1102 = vunpack.c.l.b16 %v1063
          %v1103 = vpack.c.b16 %v1088, %v1087
          %v1104 = vpack.c.b16 %v1090, %v1089
          %v1105 = vpack.c.b16 %v1092, %v1091
          %v1106 = vpack.c.b16 %v1094, %v1093
          %v1107 = vpack.c.b16 %v1096, %v1095
          %v1108 = vpack.c.b16 %v1098, %v1097
          %v1109 = vpack.c.b16 %v1100, %v1099
          %v1110 = vpack.c.b16 %v1102, %v1101
          %1119 = vmatprep.subr.bf16.mxu0 0
          %1120 = vmatpush1.bf16.msra.mxu0 %v1103
          %1121 = vmatprep.subr.bf16.mxu0 0
          %1122 = vmatpush1.bf16.msra.mxu0 %v1104
          %1123 = vmatprep.subr.bf16.mxu0 0
          %1124 = vmatpush1.bf16.msra.mxu0 %v1105
          %1125 = vmatprep.subr.bf16.mxu0 0
          %1126 = vmatpush1.bf16.msra.mxu0 %v1106
          %1127 = vmatprep.subr.bf16.mxu0 0
          %1128 = vmatpush1.bf16.msra.mxu0 %v1107
          %1129 = vmatprep.subr.bf16.mxu0 0
          %1130 = vmatpush1.bf16.msra.mxu0 %v1108
          %1131 = vmatprep.subr.bf16.mxu0 0
          %1132 = vmatpush1.bf16.msra.mxu0 %v1109
          %1133 = vmatprep.subr.bf16.mxu0 0
          %1134 = vmatpush1.bf16.msra.mxu0 %v1110
          %1135 = vmatprep.subr.bf16.mxu0 0
          %1136 = vmatpush1.bf16.msra.mxu0 0
          %1137 = vmatprep.subr.bf16.mxu0 0
          %1138 = vmatpush1.bf16.msra.mxu0 0
          %1139 = vmatprep.subr.bf16.mxu0 0
          %1140 = vmatpush1.bf16.msra.mxu0 0
          %1141 = vmatprep.subr.bf16.mxu0 0
          %1142 = vmatpush1.bf16.msra.mxu0 0
          %1143 = vmatprep.subr.bf16.mxu0 0
          %1144 = vmatpush1.bf16.msra.mxu0 0
          %1145 = vmatprep.subr.bf16.mxu0 0
          %1146 = vmatpush1.bf16.msra.mxu0 0
          %1147 = vmatprep.subr.bf16.mxu0 0
          %1148 = vmatpush1.bf16.msra.mxu0 0
          %1149 = vmatprep.subr.bf16.mxu0 0
          %1150 = vmatpush1.bf16.msra.mxu0 0
          %1151 = vmatprep.mubr.bf16.mxu0 0
          %1152 = vmatmul.mubr.bf16.gmra.mrb[0].mxu0 %v1032
          %v1153 = vpop.f32.mrb[0].mxu0
          %v1154 = vadd.f32 %v1069, %v1153
          %v1155 = vpop.f32.mrb[0].mxu0
          %v1156 = vpop.f32.mrb[0].mxu0
          %v1157 = vadd.f32 %v1069, %v1156
          %v1158 = vpop.f32.mrb[0].mxu0
          %1159 = vmatprep.mubr.bf16.mxu0 0
          %1160 = vmatmul.mubr.bf16.gmra.mrb[0].mxu0 %v1033
          %v1161 = vpop.f32.mrb[0].mxu0
          %v1162 = vadd.f32 %v1069, %v1161
          %v1163 = vpop.f32.mrb[0].mxu0
          %v1164 = vpop.f32.mrb[0].mxu0
          %v1165 = vadd.f32 %v1069, %v1164
          %v1166 = vpop.f32.mrb[0].mxu0
          %1167 = vmatprep.mubr.bf16.mxu0 0
          %1168 = vmatmul.mubr.bf16.gmra.mrb[0].mxu0 %v1034
          %v1169 = vpop.f32.mrb[0].mxu0
          %v1170 = vadd.f32 %v1069, %v1169
          %v1171 = vpop.f32.mrb[0].mxu0
          %v1172 = vpop.f32.mrb[0].mxu0
          %v1173 = vadd.f32 %v1069, %v1172
          %v1174 = vpop.f32.mrb[0].mxu0
          %1175 = vmatprep.mubr.bf16.mxu0 0
          %1176 = vmatmul.mubr.bf16.gmra.mrb[0].mxu0 %v1035
          %v1177 = vpop.f32.mrb[0].mxu0
          %v1178 = vadd.f32 %v1069, %v1177
          %v1179 = vpop.f32.mrb[0].mxu0
          %v1180 = vpop.f32.mrb[0].mxu0
          %v1181 = vadd.f32 %v1069, %v1180
          %v1182 = vpop.f32.mrb[0].mxu0
          %1183 = vmatprep.mubr.bf16.mxu0 0
          %1184 = vmatmul.mubr.bf16.gmra.mrb[0].mxu0 %v1036
          %v1185 = vpop.f32.mrb[0].mxu0
          %v1186 = vadd.f32 %v1069, %v1185
          %v1187 = vpop.f32.mrb[0].mxu0
          %v1188 = vpop.f32.mrb[0].mxu0
          %v1189 = vadd.f32 %v1069, %v1188
          %v1190 = vpop.f32.mrb[0].mxu0
          %1191 = vmatprep.mubr.bf16.mxu0 0
          %1192 = vmatmul.mubr.bf16.gmra.mrb[0].mxu0 %v1037
          %v1193 = vpop.f32.mrb[0].mxu0
          %v1194 = vadd.f32 %v1069, %v1193
          %v1195 = vpop.f32.mrb[0].mxu0
          %v1196 = vpop.f32.mrb[0].mxu0
          %v1197 = vadd.f32 %v1069, %v1196
          %v1198 = vpop.f32.mrb[0].mxu0
          %1199 = vmatprep.mubr.bf16.mxu0 0
          %1200 = vmatmul.mubr.bf16.gmra.mrb[0].mxu0 %v1038
          %v1201 = vpop.f32.mrb[0].mxu0
          %v1202 = vadd.f32 %v1069, %v1201
          %v1203 = vpop.f32.mrb[0].mxu0
          %v1204 = vpop.f32.mrb[0].mxu0
          %v1205 = vadd.f32 %v1069, %v1204
          %v1206 = vpop.f32.mrb[0].mxu0
          %1207 = vmatprep.mubr.bf16.mxu0 0
          %1208 = vmatmul.mubr.bf16.gmra.mrb[0].mxu0 %v1039
          %v1209 = vpop.f32.mrb[0].mxu0
          %v1210 = vadd.f32 %v1069, %v1209
          %v1211 = vpop.f32.mrb[0].mxu0
          %v1212 = vpop.f32.mrb[0].mxu0
          %v1213 = vadd.f32 %v1069, %v1212
          %v1214 = vpop.f32.mrb[0].mxu0
          %1215 = vmatprep.mubr.bf16.mxu0 0
          %1216 = vmatmul.mubr.bf16.gmra.mrb[0].mxu0 %v1040
          %v1217 = vpop.f32.mrb[0].mxu0
          %v1218 = vadd.f32 %v1069, %v1217
          %v1219 = vpop.f32.mrb[0].mxu0
          %v1220 = vpop.f32.mrb[0].mxu0
          %v1221 = vadd.f32 %v1069, %v1220
          %v1222 = vpop.f32.mrb[0].mxu0
          %1223 = vmatprep.mubr.bf16.mxu0 0
          %1224 = vmatmul.mubr.bf16.gmra.mrb[0].mxu0 %v1041
          %v1225 = vpop.f32.mrb[0].mxu0
          %v1226 = vadd.f32 %v1069, %v1225
          %v1227 = vpop.f32.mrb[0].mxu0
          %v1228 = vpop.f32.mrb[0].mxu0
          %v1229 = vadd.f32 %v1069, %v1228
          %v1230 = vpop.f32.mrb[0].mxu0
          %1231 = vmatprep.mubr.bf16.mxu0 0
          %1232 = vmatmul.mubr.bf16.gmra.mrb[0].mxu0 %v1042
          %v1233 = vpop.f32.mrb[0].mxu0
          %v1234 = vadd.f32 %v1069, %v1233
          %v1235 = vpop.f32.mrb[0].mxu0
          %v1236 = vpop.f32.mrb[0].mxu0
          %v1237 = vadd.f32 %v1069, %v1236
          %v1238 = vpop.f32.mrb[0].mxu0
          %1239 = vmatprep.mubr.bf16.mxu0 0
          %1240 = vmatmul.mubr.bf16.gmra.mrb[0].mxu0 %v1043
          %v1241 = vpop.f32.mrb[0].mxu0
          %v1242 = vadd.f32 %v1069, %v1241
          %v1243 = vpop.f32.mrb[0].mxu0
          %v1244 = vpop.f32.mrb[0].mxu0
          %v1245 = vadd.f32 %v1069, %v1244
          %v1246 = vpop.f32.mrb[0].mxu0
          %1247 = vmatprep.mubr.bf16.mxu0 0
          %1248 = vmatmul.mubr.bf16.gmra.mrb[0].mxu0 %v1044
          %v1249 = vpop.f32.mrb[0].mxu0
          %v1250 = vadd.f32 %v1069, %v1249
          %v1251 = vpop.f32.mrb[0].mxu0
          %v1252 = vpop.f32.mrb[0].mxu0
          %v1253 = vadd.f32 %v1069, %v1252
          %v1254 = vpop.f32.mrb[0].mxu0
          %1255 = vmatprep.mubr.bf16.mxu0 0
          %1256 = vmatmul.mubr.bf16.gmra.mrb[0].mxu0 %v1045
          %v1257 = vpop.f32.mrb[0].mxu0
          %v1258 = vadd.f32 %v1069, %v1257
          %v1259 = vpop.f32.mrb[0].mxu0
          %v1260 = vpop.f32.mrb[0].mxu0
          %v1261 = vadd.f32 %v1069, %v1260
          %v1262 = vpop.f32.mrb[0].mxu0
          %1263 = vmatprep.mubr.bf16.mxu0 0
          %1264 = vmatmul.mubr.bf16.gmra.mrb[0].mxu0 %v1046
          %v1265 = vpop.f32.mrb[0].mxu0
          %v1266 = vadd.f32 %v1069, %v1265
          %v1267 = vpop.f32.mrb[0].mxu0
          %v1268 = vpop.f32.mrb[0].mxu0
          %v1269 = vadd.f32 %v1069, %v1268
          %v1270 = vpop.f32.mrb[0].mxu0
          %1271 = vmatprep.mubr.bf16.mxu0 0
          %1272 = vmatmul.mubr.bf16.gmra.mrb[0].mxu0 %v1047
          %v1273 = vpop.f32.mrb[0].mxu0
          %v1274 = vadd.f32 %v1069, %v1273
          %v1275 = vpop.f32.mrb[0].mxu0
          %v1276 = vpop.f32.mrb[0].mxu0
          %v1277 = vadd.f32 %v1069, %v1276
          %v1278 = vpop.f32.mrb[0].mxu0
          %1279 = vdwg.mxu0
          %v1280 = vmax.f32 %v1154, 0.0
          %v1281 = vmax.f32 %v1157, 0.0
          %v1282 = vmax.f32 %v1162, 0.0
          %v1283 = vmax.f32 %v1165, 0.0
          %v1284 = vmax.f32 %v1170, 0.0
          %v1285 = vmax.f32 %v1173, 0.0
          %v1286 = vmax.f32 %v1178, 0.0
          %v1287 = vmax.f32 %v1181, 0.0
          %v1288 = vmax.f32 %v1186, 0.0
          %v1289 = vmax.f32 %v1189, 0.0
          %v1290 = vmax.f32 %v1194, 0.0
          %v1291 = vmax.f32 %v1197, 0.0
          %v1292 = vmax.f32 %v1202, 0.0
          %v1293 = vmax.f32 %v1205, 0.0
          %v1294 = vmax.f32 %v1210, 0.0
          %v1295 = vmax.f32 %v1213, 0.0
          %v1296 = vmax.f32 %v1218, 0.0
          %v1297 = vmax.f32 %v1221, 0.0
          %v1298 = vmax.f32 %v1226, 0.0
          %v1299 = vmax.f32 %v1229, 0.0
          %v1300 = vmax.f32 %v1234, 0.0
          %v1301 = vmax.f32 %v1237, 0.0
          %v1302 = vmax.f32 %v1242, 0.0
          %v1303 = vmax.f32 %v1245, 0.0
          %v1304 = vmax.f32 %v1250, 0.0
          %v1305 = vmax.f32 %v1253, 0.0
          %v1306 = vmax.f32 %v1258, 0.0
          %v1307 = vmax.f32 %v1261, 0.0
          %v1308 = vmax.f32 %v1266, 0.0
          %v1309 = vmax.f32 %v1269, 0.0
          %v1310 = vmax.f32 %v1274, 0.0
          %v1311 = vmax.f32 %v1277, 0.0
          %1312 = vst [vmem:[%s353] sm:$0xff] %v1280
          %1313 = vst [vmem:[%s353 + $0x8] sm:$0xff] %v1281
          %1314 = vst [vmem:[%s353 + $0x10] sm:$0xff] %v1282
          %1315 = vst [vmem:[%s353 + $0x18] sm:$0xff] %v1283
          %1316 = vst [vmem:[%s353 + $0x20] sm:$0xff] %v1284
          %1317 = vst [vmem:[%s353 + $0x28] sm:$0xff] %v1285
          %1318 = vst [vmem:[%s353 + $0x30] sm:$0xff] %v1286
          %1319 = vst [vmem:[%s353 + $0x38] sm:$0xff] %v1287
          %1320 = vst [vmem:[%s353 + $0x40] sm:$0xff] %v1288
          %1321 = vst [vmem:[%s353 + $0x48] sm:$0xff] %v1289
          %1322 = vst [vmem:[%s353 + $0x50] sm:$0xff] %v1290
          %1323 = vst [vmem:[%s353 + $0x58] sm:$0xff] %v1291
          %1324 = vst [vmem:[%s353 + $0x60] sm:$0xff] %v1292
          %1325 = vst [vmem:[%s353 + $0x68] sm:$0xff] %v1293
          %1326 = vst [vmem:[%s353 + $0x70] sm:$0xff] %v1294
          %1327 = vst [vmem:[%s353 + $0x78] sm:$0xff] %v1295
          %1328 = vst [vmem:[%s353 + $0x80] sm:$0xff] %v1296
          %1329 = vst [vmem:[%s353 + $0x88] sm:$0xff] %v1297
          %1330 = vst [vmem:[%s353 + $0x90] sm:$0xff] %v1298
          %1331 = vst [vmem:[%s353 + $0x98] sm:$0xff] %v1299
          %1332 = vst [vmem:[%s353 + $0xa0] sm:$0xff] %v1300
          %1333 = vst [vmem:[%s353 + $0xa8] sm:$0xff] %v1301
          %1334 = vst [vmem:[%s353 + $0xb0] sm:$0xff] %v1302
          %1335 = vst [vmem:[%s353 + $0xb8] sm:$0xff] %v1303
          %1336 = vst [vmem:[%s353 + $0xc0] sm:$0xff] %v1304
          %1337 = vst [vmem:[%s353 + $0xc8] sm:$0xff] %v1305
          %1338 = vst [vmem:[%s353 + $0xd0] sm:$0xff] %v1306
          %1339 = vst [vmem:[%s353 + $0xd8] sm:$0xff] %v1307
          %1340 = vst [vmem:[%s353 + $0xe0] sm:$0xff] %v1308
          %1341 = vst [vmem:[%s353 + $0xe8] sm:$0xff] %v1309
          %1342 = vst [vmem:[%s353 + $0xf0] sm:$0xff] %v1310
          %1343 = vst [vmem:[%s353 + $0xf8] sm:$0xff] %v1311
        $region68: #{tpu_custom_call.1} parent=43 // pred_fallthru
          _
        %s1344 = sand.u32 %s183, 1
        %s1345 = scalar_lea.sflag [#allocation6], %s1344
        %s1346 = sand.u32 %s183, 1
        %s1347 = smul.addr %s1346, 256
        %s1348 = scalar_lea.vmem [#allocation11], %s1347
        // Predicated region
        $region69: #{tpu_custom_call.1} parent=43 // pred_check
          %p1349 = pneg %p193
        $region70: #{tpu_custom_call.1} parent=43 // pred_check_branch
          %1351 = sbr.rel (%p1349) target = $region72
        $region71: #{tpu_custom_call.1} parent=43 // pred_region
          %s1352 = smul.u32 32, %s29
          %s1354 = ssub.s32 4096, 4096
          %1355 = vsyncadd %s1345, %s1354
          %s1356 = smul.addr %s1352, 128
          %s1357 = scalar_lea.hbm %s6, %s1356
          %s1358 = sshll.u32 %s1348, 4
          %s1359 = int_to_ptr.vmem [resolvable:$true] %s1358
          %1364 = dma.vmem_to_hbm [thread:$0]  %s1359, 4096, %s1357, %s1345, 128, 128, 8
        $region72: #{tpu_custom_call.1} parent=43 // pred_fallthru
          _
      $region44: #{tpu_custom_call.1} parent=5 // pred_fallthru
        _
      %p1365 = scmp.le.s32.totalorder 2, %s20
      // Predicated region
      $region73: #{tpu_custom_call.1} parent=5 // pred_check
        %p1366 = pneg %p1365
      $region74: #{tpu_custom_call.1} parent=5 // pred_check_branch
        %1368 = sbr.rel (%p1366) target = $region76
      $region75: #{tpu_custom_call.1} parent=5 // pred_region
        %s1369 = ssub.s32 %s20, 2
        // Predicated region
        $region77: #{tpu_custom_call.1} parent=75 // pred_check
          %p1370 = pneg %p199
        $region78: #{tpu_custom_call.1} parent=75 // pred_check_branch
          %1372 = sbr.rel (%p1370) target = $region80
        $region79: #{tpu_custom_call.1} parent=75 // pred_region
          %s1373 = sand.u32 %s184, 1
          %s1374 = scalar_lea.sflag [#allocation6], %s1373
          %s1375 = sand.u32 %s184, 1
          %s1376 = smul.addr %s1375, 256
          %s1377 = scalar_lea.vmem [#allocation11], %s1376
          %1378 = dma.done %s1374, 4096
        $region80: #{tpu_custom_call.1} parent=75 // pred_fallthru
          _
      $region76: #{tpu_custom_call.1} parent=5 // pred_fallthru
        _
    $region6: #{tpu_custom_call.1} parent=1 // loop_footer
      %s24 = sadd.s32 1, %s20
    $region7: #{tpu_custom_call.1} parent=1 // loop_footer_branch
      %19 = sbr.rel target = $region3
    $region8: #{tpu_custom_call.1} parent=1 // loop_exit
      _
    %1379 = vsyncpa [#allocation5], 1
    %s1380 = scalar_lea.sflag [#allocation5], 1
    %1381 = vsyncpa %s1380, 1
    %1382 = vsyncpa [#allocation8], 1
    %1383 = vsyncpa [#allocation6], 1
    %s1384 = scalar_lea.sflag [#allocation6], 1
    %1385 = vsyncpa %s1384, 1

</llo_original>
